<compile_context>
chip_gen: v5e
topology: v5e:2x2
jax: 0.10.0
libtpu: 0.0.40
codegen_flags: <defaults>
</compile_context>

<pallas_src>
import functools

import jax
import jax.numpy as jnp
from jax.experimental import pallas as pl
from jax.experimental.pallas import tpu as pltpu


def _round_up(x, m):
    return (x + m - 1) // m * m


def _pick_tile(dim, align, max_tile):
    """Return (padded_dim, tile) with tile | padded_dim and tile % align == 0."""
    padded = _round_up(dim, align)
    if padded <= max_tile:
        return padded, padded
    return _round_up(padded, max_tile), max_tile


# ----------------------------------------------------------------------------
# Pallas kernels: fused GEMM + per-channel scale/shift (+ activation)
# ----------------------------------------------------------------------------
def _mm_bn_act_single_k(x_ref, w_ref, s_ref, b_ref, o_ref, *, act):
    acc = jnp.dot(x_ref[...], w_ref[...], preferred_element_type=jnp.float32)
    y = acc * s_ref[...] + b_ref[...]
    if act == "relu":
        y = jnp.maximum(y, 0.0)
    elif act == "sigmoid":
        y = jax.nn.sigmoid(y)
    o_ref[...] = y.astype(o_ref.dtype)


def _mm_bn_act_multi_k(x_ref, w_ref, s_ref, b_ref, o_ref, acc_ref, *, act):
    k = pl.program_id(2)

    @pl.when(k == 0)
    def _():
        acc_ref[...] = jnp.zeros_like(acc_ref)

    acc_ref[...] += jnp.dot(x_ref[...], w_ref[...],
                            preferred_element_type=jnp.float32)

    @pl.when(k == pl.num_programs(2) - 1)
    def _():
        y = acc_ref[...] * s_ref[...] + b_ref[...]
        if act == "relu":
            y = jnp.maximum(y, 0.0)
        elif act == "sigmoid":
            y = jax.nn.sigmoid(y)
        o_ref[...] = y.astype(o_ref.dtype)


def matmul_bn_act(x, w, scale, shift, act="none", out_dtype=jnp.float32):
    """Fused (M,K)@(K,N) * scale + shift (+activation). bf16 operands, f32 acc."""
    M, K = x.shape
    _, N = w.shape
    Mp, TM = _pick_tile(M, 8, 256)
    Np, TN = _pick_tile(N, 128, 256)
    Kp, TK = _pick_tile(K, 128, 512)

    xp = jnp.pad(x.astype(jnp.bfloat16), ((0, Mp - M), (0, Kp - K)))
    wp = jnp.pad(w.astype(jnp.bfloat16), ((0, Kp - K), (0, Np - N)))
    sp = jnp.pad(scale.astype(jnp.float32), (0, Np - N)).reshape(1, Np)
    bp = jnp.pad(shift.astype(jnp.float32), (0, Np - N)).reshape(1, Np)

    nk = Kp // TK
    if nk == 1:
        # K fits in one tile: no reduction grid axis, no accumulator scratch.
        out = pl.pallas_call(
            functools.partial(_mm_bn_act_single_k, act=act),
            out_shape=jax.ShapeDtypeStruct((Mp, Np), out_dtype),
            grid_spec=pltpu.PrefetchScalarGridSpec(
                num_scalar_prefetch=0,
                grid=(Mp // TM, Np // TN),
                in_specs=[
                    pl.BlockSpec((TM, TK), lambda i, j: (i, 0)),
                    pl.BlockSpec((TK, TN), lambda i, j: (0, j)),
                    pl.BlockSpec((1, TN), lambda i, j: (0, j)),
                    pl.BlockSpec((1, TN), lambda i, j: (0, j)),
                ],
                out_specs=pl.BlockSpec((TM, TN), lambda i, j: (i, j)),
            ),
            compiler_params=pltpu.CompilerParams(
                dimension_semantics=("parallel", "parallel")),
        )(xp, wp, sp, bp)
    else:
        out = pl.pallas_call(
            functools.partial(_mm_bn_act_multi_k, act=act),
            out_shape=jax.ShapeDtypeStruct((Mp, Np), out_dtype),
            grid_spec=pltpu.PrefetchScalarGridSpec(
                num_scalar_prefetch=0,
                grid=(Mp // TM, Np // TN, nk),
                in_specs=[
                    pl.BlockSpec((TM, TK), lambda i, j, k: (i, k)),
                    pl.BlockSpec((TK, TN), lambda i, j, k: (k, j)),
                    pl.BlockSpec((1, TN), lambda i, j, k: (0, j)),
                    pl.BlockSpec((1, TN), lambda i, j, k: (0, j)),
                ],
                out_specs=pl.BlockSpec((TM, TN), lambda i, j, k: (i, j)),
                scratch_shapes=[pltpu.VMEM((TM, TN), jnp.float32)],
            ),
            compiler_params=pltpu.CompilerParams(
                dimension_semantics=("parallel", "parallel", "arbitrary")),
        )(xp, wp, sp, bp)
    return out[:M, :N]


# ----------------------------------------------------------------------------
# Layer wrappers (thin XLA glue around the fused Pallas GEMM)
# ----------------------------------------------------------------------------
def bn_fold(bn, bias=None, eps=1e-5):
    scale = bn["gamma"] / jnp.sqrt(bn["var"] + eps)
    b = bias if bias is not None else 0.0
    shift = (b - bn["mean"]) * scale + bn["beta"]
    return scale, shift


def conv1x1_bn_act(x, w_oihw, scale, shift, act="relu", out_dtype=jnp.float32):
    """1x1 Conv2d + folded BN + activation on an NHWC tensor."""
    N, H, W, C = x.shape
    OC = w_oihw.shape[0]
    wm = jnp.transpose(w_oihw[:, :, 0, 0], (1, 0))                 # (IC, OC)
    y = matmul_bn_act(x.reshape(N * H * W, C), wm, scale, shift,
                      act=act, out_dtype=out_dtype)
    return y.reshape(N, H, W, OC)


def conv_transpose3x3_s2_bn_act(x, w_iohw, scale, shift, act="relu",
                                out_dtype=jnp.float32):
    """ConvTranspose2d(k=3, stride=2, padding=1, output_padding=1) + BN + act.

    Decomposed into the 4 output-parity phases and run as a single fused GEMM:
      out[2iy+py, 2ix+px, oc] = sum_{(dy,ky),(dx,kx) active for (py,px)}
                                x[iy+dy, ix+dx, :] @ w[:, oc, ky, kx]
    """
    N, H, W, C = x.shape
    IC, OC, KH, KW = w_iohw.shape
    assert (IC, KH, KW) == (C, 3, 3)

    # Shifted activation copies (zero beyond the far edge), concat on channels.
    xp = jnp.pad(x, ((0, 0), (0, 1), (0, 1), (0, 0)))
    shifts = [xp[:, dy:dy + H, dx:dx + W, :] for dy in (0, 1) for dx in (0, 1)]
    patches = jnp.concatenate(shifts, axis=-1).reshape(N * H * W, 4 * C)

    # Parity-phase weight matrix (4*C, 4*OC); phase p = 2*py+px, shift s = 2*dy+dx.
    row_taps = {0: ((0, 1),), 1: ((1, 0), (0, 2))}   # (dy, ky)
    col_taps = {0: ((0, 1),), 1: ((1, 0), (0, 2))}   # (dx, kx)
    wbig = jnp.zeros((4, C, 4, OC), jnp.float32)
    for py in (0, 1):
        for px in (0, 1):
            phase = 2 * py + px
            for dy, ky in row_taps[py]:
                for dx, kx in col_taps[px]:
                    s = 2 * dy + dx
                    wbig = wbig.at[s, :, phase, :].set(w_iohw[:, :, ky, kx])
    wbig = wbig.reshape(4 * C, 4 * OC)

    y = matmul_bn_act(patches, wbig, jnp.tile(scale, 4), jnp.tile(shift, 4),
                      act=act, out_dtype=out_dtype)
    y = y.reshape(N, H, W, 2, 2, OC)
    y = jnp.transpose(y, (0, 1, 3, 2, 4, 5)).reshape(N, 2 * H, 2 * W, OC)
    return y


# ----------------------------------------------------------------------------
# Parameters (deterministic, synthetic) and forward pass
# ----------------------------------------------------------------------------
class _KeyGen:
    def __init__(self, key):
        self._key = key

    def __call__(self):
        self._key, sub = jax.random.split(self._key)
        return sub


def _bn(kg, c):
    return dict(gamma=1.0 + 0.01 * jax.random.normal(kg(), (c,), jnp.float32),
                beta=0.01 * jax.random.normal(kg(), (c,), jnp.float32),
                mean=0.01 * jax.random.normal(kg(), (c,), jnp.float32),
                var=1.0 + 0.1 * jax.random.uniform(kg(), (c,), jnp.float32))


def init_decoder_block_params(key, in_channels, n_filters):
    kg = _KeyGen(key)
    mid = in_channels // 4
    return dict(
        conv1=0.05 * jax.random.normal(kg(), (mid, in_channels, 1, 1), jnp.float32),
        conv1_b=0.01 * jax.random.normal(kg(), (mid,), jnp.float32),
        bn1=_bn(kg, mid),
        deconv2=0.05 * jax.random.normal(kg(), (mid, mid, 3, 3), jnp.float32),
        deconv2_b=0.01 * jax.random.normal(kg(), (mid,), jnp.float32),
        bn2=_bn(kg, mid),
        conv3=0.05 * jax.random.normal(kg(), (n_filters, mid, 1, 1), jnp.float32),
        conv3_b=0.01 * jax.random.normal(kg(), (n_filters,), jnp.float32),
        bn3=_bn(kg, n_filters),
    )


def decoder_block_forward(params, x_nchw):
    x = jnp.transpose(x_nchw, (0, 2, 3, 1)).astype(jnp.float32)    # NCHW -> NHWC
    s1, b1 = bn_fold(params["bn1"], bias=params["conv1_b"])
    x = conv1x1_bn_act(x, params["conv1"], s1, b1, act="relu",
                       out_dtype=jnp.bfloat16)
    s2, b2 = bn_fold(params["bn2"], bias=params["deconv2_b"])
    x = conv_transpose3x3_s2_bn_act(x, params["deconv2"], s2, b2, act="relu",
                                    out_dtype=jnp.bfloat16)
    s3, b3 = bn_fold(params["bn3"], bias=params["conv3_b"])
    x = conv1x1_bn_act(x, params["conv3"], s3, b3, act="relu",
                       out_dtype=jnp.float32)
    return jnp.transpose(x, (0, 3, 1, 2))                           # NHWC -> NCHW


# Pure-XLA f32 reference, only for a correctness sanity check.
def _reference_forward(params, x_nchw, eps=1e-5):
    def bn(y, p):
        return (y - p["mean"]) / jnp.sqrt(p["var"] + eps) * p["gamma"] + p["beta"]

    x = jnp.transpose(x_nchw, (0, 2, 3, 1)).astype(jnp.float32)
    y = jnp.einsum("nhwc,oc->nhwo", x, params["conv1"][:, :, 0, 0]) + params["conv1_b"]
    y = jax.nn.relu(bn(y, params["bn1"]))
    wf = jnp.transpose(params["deconv2"][:, :, ::-1, ::-1], (2, 3, 0, 1))  # HWIO
    y = jax.lax.conv_general_dilated(
        y, wf, window_strides=(1, 1), padding=((1, 2), (1, 2)),
        lhs_dilation=(2, 2),
        dimension_numbers=("NHWC", "HWIO", "NHWC")) + params["deconv2_b"]
    y = jax.nn.relu(bn(y, params["bn2"]))
    y = jnp.einsum("nhwc,oc->nhwo", y, params["conv3"][:, :, 0, 0]) + params["conv3_b"]
    y = jax.nn.relu(bn(y, params["bn3"]))
    return jnp.transpose(y, (0, 3, 1, 2))


if __name__ == "__main__":
    in_channels, n_filters = 64, 32
    root = jax.random.PRNGKey(0)
    pkey, xkey = jax.random.split(root)
    params = init_decoder_block_params(pkey, in_channels, n_filters)
    x = jax.random.normal(xkey, (2, in_channels, 16, 16), jnp.float32)

    fwd = jax.jit(decoder_block_forward)
    y = fwd(params, x)
    jax.block_until_ready(y)

    assert y.shape == (2, n_filters, 32, 32), y.shape
    assert bool(jnp.all(jnp.isfinite(y)))

    y_ref = _reference_forward(params, x)
    err = float(jnp.max(jnp.abs(y - y_ref.astype(y.dtype))))
    tol = 5e-2 * (1.0 + float(jnp.max(jnp.abs(y_ref))))
    assert err <= tol, (err, tol)
    print("KERNEL_OK")
</pallas_src>

<mosaic_0001>
module attributes {stable_mosaic.version = 11 : i64} {
  func.func @_mm_bn_act_single_k(%arg0: i32, %arg1: i32, %arg2: memref<256x128xbf16, #tpu.memory_space<vmem>>, %arg3: memref<128x128xbf16, #tpu.memory_space<vmem>>, %arg4: memref<1x128xf32, #tpu.memory_space<vmem>>, %arg5: memref<1x128xf32, #tpu.memory_space<vmem>>, %arg6: memref<256x128xbf16, #tpu.memory_space<vmem>>) attributes {dimension_semantics = [#tpu.dimension_semantics<parallel>, #tpu.dimension_semantics<parallel>], iteration_bounds = array<i64: 2, 1>, scalar_prefetch = 0 : i64, scratch_operands = 0 : i64, tpu.core_type = #tpu.core_type<tc>, window_params = [{transform_indices = @transform_0, window_bounds = array<i64: 256, 128>}, {transform_indices = @transform_1, window_bounds = array<i64: 128, 128>}, {transform_indices = @transform_2, window_bounds = array<i64: 1, 128>}, {transform_indices = @transform_3, window_bounds = array<i64: 1, 128>}, {transform_indices = @transform_4, window_bounds = array<i64: 256, 128>}]} {
    %c0 = arith.constant 0 : index
    %c0_0 = arith.constant 0 : index
    %0 = vector.load %arg2[%c0, %c0_0] : memref<256x128xbf16, #tpu.memory_space<vmem>>, vector<256x128xbf16>
    %c0_1 = arith.constant 0 : index
    %c0_2 = arith.constant 0 : index
    %1 = vector.load %arg3[%c0_1, %c0_2] : memref<128x128xbf16, #tpu.memory_space<vmem>>, vector<128x128xbf16>
    %cst = arith.constant dense<0.000000e+00> : vector<256x128xf32>
    %2 = tpu.matmul %0, %1, %cst {dimension_numbers = #tpu.dot_dimension_numbers<[1], [0], [0], [1], [0, 0, 1, 1], [], []>} : vector<256x128xbf16>, vector<128x128xbf16>, vector<256x128xf32> -> vector<256x128xf32>
    %c0_3 = arith.constant 0 : index
    %c0_4 = arith.constant 0 : index
    %3 = vector.load %arg4[%c0_3, %c0_4] : memref<1x128xf32, #tpu.memory_space<vmem>>, vector<1x128xf32>
    %4 = vector.broadcast %3 : vector<1x128xf32> to vector<256x128xf32>
    %5 = arith.mulf %2, %4 : vector<256x128xf32>
    %c0_5 = arith.constant 0 : index
    %c0_6 = arith.constant 0 : index
    %6 = vector.load %arg5[%c0_5, %c0_6] : memref<1x128xf32, #tpu.memory_space<vmem>>, vector<1x128xf32>
    %7 = vector.broadcast %6 : vector<1x128xf32> to vector<256x128xf32>
    %8 = arith.addf %5, %7 : vector<256x128xf32>
    %cst_7 = arith.constant 0.000000e+00 : f32
    %9 = vector.broadcast %cst_7 : f32 to vector<256x128xf32>
    %10 = arith.maximumf %8, %9 : vector<256x128xf32>
    %11 = arith.truncf %10 : vector<256x128xf32> to vector<256x128xbf16>
    %c0_8 = arith.constant 0 : index
    %c0_9 = arith.constant 0 : index
    %12 = vector.load %arg6[%c0_8, %c0_9] : memref<256x128xbf16, #tpu.memory_space<vmem>>, vector<256x128xbf16>
    tpu.vector_store %arg6[%c0_8, %c0_9], %11 {strides = array<i32>} : memref<256x128xbf16, #tpu.memory_space<vmem>>, vector<256x128xbf16>,
    return
  }
  func.func @transform_0(%arg0: i32, %arg1: i32) -> (i32, i32) {
    %c0_i32 = arith.constant 0 : i32
    %c0_i32_0 = arith.constant 0 : i32
    return %arg0, %c0_i32 : i32, i32
  }
  func.func @transform_1(%arg0: i32, %arg1: i32) -> (i32, i32) {
    %c0_i32 = arith.constant 0 : i32
    %c0_i32_0 = arith.constant 0 : i32
    return %c0_i32, %arg1 : i32, i32
  }
  func.func @transform_2(%arg0: i32, %arg1: i32) -> (i32, i32) {
    %c0_i32 = arith.constant 0 : i32
    %c0_i32_0 = arith.constant 0 : i32
    return %c0_i32, %arg1 : i32, i32
  }
  func.func @transform_3(%arg0: i32, %arg1: i32) -> (i32, i32) {
    %c0_i32 = arith.constant 0 : i32
    %c0_i32_0 = arith.constant 0 : i32
    return %c0_i32, %arg1 : i32, i32
  }
  func.func @transform_4(%arg0: i32, %arg1: i32) -> (i32, i32) {
    %c0_i32 = arith.constant 0 : i32
    return %arg0, %arg1 : i32, i32
  }
}

module attributes {stable_mosaic.version = 11 : i64} {
  func.func @_mm_bn_act_single_k(%arg0: i32, %arg1: i32, %arg2: memref<256x128xbf16, #tpu.memory_space<vmem>>, %arg3: memref<128x128xbf16, #tpu.memory_space<vmem>>, %arg4: memref<1x128xf32, #tpu.memory_space<vmem>>, %arg5: memref<1x128xf32, #tpu.memory_space<vmem>>, %arg6: memref<256x128xf32, #tpu.memory_space<vmem>>) attributes {dimension_semantics = [#tpu.dimension_semantics<parallel>, #tpu.dimension_semantics<parallel>], iteration_bounds = array<i64: 8, 1>, scalar_prefetch = 0 : i64, scratch_operands = 0 : i64, tpu.core_type = #tpu.core_type<tc>, window_params = [{transform_indices = @transform_0, window_bounds = array<i64: 256, 128>}, {transform_indices = @transform_1, window_bounds = array<i64: 128, 128>}, {transform_indices = @transform_2, window_bounds = array<i64: 1, 128>}, {transform_indices = @transform_3, window_bounds = array<i64: 1, 128>}, {transform_indices = @transform_4, window_bounds = array<i64: 256, 128>}]} {
    %c0 = arith.constant 0 : index
    %c0_0 = arith.constant 0 : index
    %0 = vector.load %arg2[%c0, %c0_0] : memref<256x128xbf16, #tpu.memory_space<vmem>>, vector<256x128xbf16>
    %c0_1 = arith.constant 0 : index
    %c0_2 = arith.constant 0 : index
    %1 = vector.load %arg3[%c0_1, %c0_2] : memref<128x128xbf16, #tpu.memory_space<vmem>>, vector<128x128xbf16>
    %cst = arith.constant dense<0.000000e+00> : vector<256x128xf32>
    %2 = tpu.matmul %0, %1, %cst {dimension_numbers = #tpu.dot_dimension_numbers<[1], [0], [0], [1], [0, 0, 1, 1], [], []>} : vector<256x128xbf16>, vector<128x128xbf16>, vector<256x128xf32> -> vector<256x128xf32>
    %c0_3 = arith.constant 0 : index
    %c0_4 = arith.constant 0 : index
    %3 = vector.load %arg4[%c0_3, %c0_4] : memref<1x128xf32, #tpu.memory_space<vmem>>, vector<1x128xf32>
    %4 = vector.broadcast %3 : vector<1x128xf32> to vector<256x128xf32>
    %5 = arith.mulf %2, %4 : vector<256x128xf32>
    %c0_5 = arith.constant 0 : index
    %c0_6 = arith.constant 0 : index
    %6 = vector.load %arg5[%c0_5, %c0_6] : memref<1x128xf32, #tpu.memory_space<vmem>>, vector<1x128xf32>
    %7 = vector.broadcast %6 : vector<1x128xf32> to vector<256x128xf32>
    %8 = arith.addf %5, %7 : vector<256x128xf32>
    %cst_7 = arith.constant 0.000000e+00 : f32
    %9 = vector.broadcast %cst_7 : f32 to vector<256x128xf32>
    %10 = arith.maximumf %8, %9 : vector<256x128xf32>
    %c0_8 = arith.constant 0 : index
    %c0_9 = arith.constant 0 : index
    %11 = vector.load %arg6[%c0_8, %c0_9] : memref<256x128xf32, #tpu.memory_space<vmem>>, vector<256x128xf32>
    tpu.vector_store %arg6[%c0_8, %c0_9], %10 {strides = array<i32>} : memref<256x128xf32, #tpu.memory_space<vmem>>, vector<256x128xf32>,
    return
  }
  func.func @transform_0(%arg0: i32, %arg1: i32) -> (i32, i32) {
    %c0_i32 = arith.constant 0 : i32
    %c0_i32_0 = arith.constant 0 : i32
    return %arg0, %c0_i32 : i32, i32
  }
  func.func @transform_1(%arg0: i32, %arg1: i32) -> (i32, i32) {
    %c0_i32 = arith.constant 0 : i32
    %c0_i32_0 = arith.constant 0 : i32
    return %c0_i32, %arg1 : i32, i32
  }
  func.func @transform_2(%arg0: i32, %arg1: i32) -> (i32, i32) {
    %c0_i32 = arith.constant 0 : i32
    %c0_i32_0 = arith.constant 0 : i32
    return %c0_i32, %arg1 : i32, i32
  }
  func.func @transform_3(%arg0: i32, %arg1: i32) -> (i32, i32) {
    %c0_i32 = arith.constant 0 : i32
    %c0_i32_0 = arith.constant 0 : i32
    return %c0_i32, %arg1 : i32, i32
  }
  func.func @transform_4(%arg0: i32, %arg1: i32) -> (i32, i32) {
    %c0_i32 = arith.constant 0 : i32
    return %arg0, %arg1 : i32, i32
  }
}

</mosaic_0001>

<llo_original>
// kernel: tile.18
$region0: #{tile.18}
  #allocation0 [shape = 's32[1]{0}', space=sflag, size = 0x4, scoped, tag = 'scoped memory for tile.18']
  %s0 = inlined_call_operand.vmem [shape: f32[16], index: 0, kind: input, shape index: {}]
  %s1 = inlined_call_operand.vmem [shape: f32[4,16], index: 1, kind: output, shape index: {}]
  // Predicated region
  $region2: #{tile.18} parent=0 // pred_check
    _
  $region3: #{tile.18} parent=0 // pred_check_branch
    %3 = sbr.rel (0) target = $region5
  $region4: #{tile.18} parent=0 // pred_region
    _
  $region5: #{tile.18} parent=0 // pred_fallthru
    _
  %v4 = vld [vmem:[%s0] ss:$0 sm:$0xff]
  %5 = vst [vmem:[%s1] sm:$0xf] %v4

// kernel: tile.19
$region0: #{tile.19}
  %s0 = inlined_call_operand.vmem [shape: f32[4,16], index: 0, kind: input, shape index: {}]
  %s1 = inlined_call_operand.vmem [shape: f32[64], index: 1, kind: output, shape index: {}]
  $region1: #{tile.19} parent=0
    #allocation0 [shape = 'u8[4096]{0}', space=vmem, size = 0x1000, scoped, tag = 'scoped mem for output reshape']
    #allocation1 [shape = 'u8[4096]{0}', space=vmem, size = 0x1000, scoped, tag = 'scoped mem for input reshape']
    %s3 = ssub.s32 16, 1
    %v4 = vld [vmem:[%s0] sm:%s3]
    %5 = vst [vmem:[#allocation1] sm:%s3] %v4
    %v6 = vld [vmem:[#allocation1] sm:$0x1]
    %vm7 = vcmask 130048
    %8 = vst.msk [vmem:[#allocation0] sm:$0x1] %vm7, %v6
    %s9 = scalar_lea.vmem [#allocation1], 3
    %v10 = vld [vmem:[%s9] sm:$0x1]
    %11 = vrot.lane.b32.xlu0 %v10, 48
    %v12 = vpop.permute.xlu0 %11
    %vm13 = vcmask 523648
    %14 = vst.msk [vmem:[#allocation0] sm:$0x1] %vm13, %v12
    %s15 = scalar_lea.vmem [#allocation1], 2
    %v16 = vld [vmem:[%s15] sm:$0x1]
    %17 = vrot.lane.b32.xlu0 %v16, 32
    %v18 = vpop.permute.xlu0 %17
    %vm19 = vcmask 392448
    %20 = vst.msk [vmem:[#allocation0] sm:$0x1] %vm19, %v18
    %s21 = scalar_lea.vmem [#allocation1], 1
    %v22 = vld [vmem:[%s21] sm:$0x1]
    %23 = vrot.lane.b32.xlu0 %v22, 16
    %v24 = vpop.permute.xlu0 %23
    %vm25 = vcmask 261248
    %26 = vst.msk [vmem:[#allocation0] sm:$0x1] %vm25, %v24
    %s28 = ssub.s32 2, 1
    %v29 = vld [vmem:[#allocation0] sm:%s28]
    %s31 = ssub.s32 2, 1
    %32 = vst [vmem:[%s1] sm:%s31] %v29

// kernel: decoder_block_forward.3
$region0: #{decoder_block_forward.3}
  #allocation0 [shape = 'u32[]', space=smem, size = 0x4, offset = 0x4, fixed_abs, tag = 'smem constant byte address 0x4 - core index']
  #allocation1 [shape = 'u32[72,128]{1,0:T(1,128)}', space=vmem, size = 0x9000, scoped, tag = 'internal scratch']
  %s0 = inlined_call_operand.vmem [shape: bf16[512,128], index: 0, kind: input, shape index: {}]
  %s1 = inlined_call_operand.vmem [shape: bf16[128,128], index: 1, kind: input, shape index: {}]
  %s2 = inlined_call_operand.vmem [shape: f32[1,128], index: 2, kind: input, shape index: {}]
  %s3 = inlined_call_operand.vmem [shape: f32[1,128], index: 3, kind: input, shape index: {}]
  %s4 = inlined_call_operand.vmem [shape: bf16[512,128], index: 4, kind: output, shape index: {}]
  %s5 = sld [smem:[#allocation0]]
  $region49: #{decoder_block_forward.3} parent=0
    _
  %s7 = ssub.s32 1, %s5
  %s8 = scalar_select 0, %s7, %s5
  loop: start=0, step=1, limit=4
  $region2: #{decoder_block_forward.3} parent=0 // loop_pre_header
    _
  $region3: #{decoder_block_forward.3} parent=0 // loop_header
    %s10 = sphi 0, %s14
    %p11 = scmp.ge.s32.totalorder %s10, 4
    %s17 = sphi 0, %s29
    %s18 = sphi 0, %s25
    %s19 = sphi 0, %s17
    %s20 = sphi 0, %s18
    %s21 = sphi 0, %s19
    %s22 = sphi 0, %s20
    %s32 = sphi 0, %s34
    %s35 = sphi 0, %s32
    %s36 = sphi 0, %s35
    %s52 = sphi 0, %s36
    %s58 = sphi 0, %s60
    %s61 = sphi 0, %s58
    %s62 = sphi 0, %s61
    %s78 = sphi 0, %s62
    %s84 = sphi 0, %s86
    %s87 = sphi 0, %s84
    %s88 = sphi 0, %s87
    %s104 = sphi 0, %s88
    %s110 = sphi 0, %s112
    %s113 = sphi 0, %s110
    %s114 = sphi 0, %s113
    %s130 = sphi 0, %s114
    %s138 = sphi 0, %s140
    %s141 = sphi 0, %s138
    %s142 = sphi 0, %s141
    %s158 = sphi 0, %s142
  $region4: #{decoder_block_forward.3} parent=0 // loop_header_branch
    %13 = sbr.rel (%p11) target = $region8
  $region5: #{decoder_block_forward.3} parent=0 // loop_body
    %s15 = ssub.s32 %s10, 1
    %s16 = ssub.s32 %s10, 2
    %s23 = sadd.s32 1, %s18
    %p24 = scmp.ge.s32.totalorder %s23, 1
    %s25 = scalar_select %p24, 0, %s23
    %s26 = sadd.s32 1, %s17
    %s27 = scalar_select %p24, %s26, %s17
    %p28 = scmp.ge.s32.totalorder %s27, 2
    %s29 = scalar_select %p28, 0, %s27
    %s30 = ssub.s32 %s17, %s29
    %p31 = scmp.eq.s32.totalorder %s30, 0
    %s33 = sadd.s32 %s32, 1
    %s34 = scalar_select %p31, %s32, %s33
    %p37 = pneg %p31
    %p38 = scmp.eq.s32.totalorder %s10, 1
    %p39 = por %p37, %p38
    %p40 = scmp.ne.s32.totalorder %s32, %s35
    %p41 = scmp.eq.s32.totalorder %s10, 0
    %p42 = por %p40, %p41
    %p43 = scmp.ne.s32.totalorder %s32, %s35
    %p44 = scmp.eq.s32.totalorder %s15, 1
    %p45 = por %p43, %p44
    %p46 = scmp.ne.s32.totalorder %s35, %s36
    %p47 = scmp.eq.s32.totalorder %s15, 0
    %p48 = por %p46, %p47
    %p49 = scmp.ne.s32.totalorder %s35, %s36
    %p50 = scmp.eq.s32.totalorder %s16, 1
    %p51 = por %p49, %p50
    %p53 = scmp.ne.s32.totalorder %s36, %s52
    %p54 = scmp.eq.s32.totalorder %s16, 0
    %p55 = por %p53, %p54
    %s56 = ssub.s32 %s18, %s25
    %p57 = scmp.eq.s32.totalorder %s56, 0
    %s59 = sadd.s32 %s58, 1
    %s60 = scalar_select %p57, %s58, %s59
    %p63 = pneg %p57
    %p64 = scmp.eq.s32.totalorder %s10, 1
    %p65 = por %p63, %p64
    %p66 = scmp.ne.s32.totalorder %s58, %s61
    %p67 = scmp.eq.s32.totalorder %s10, 0
    %p68 = por %p66, %p67
    %p69 = scmp.ne.s32.totalorder %s58, %s61
    %p70 = scmp.eq.s32.totalorder %s15, 1
    %p71 = por %p69, %p70
    %p72 = scmp.ne.s32.totalorder %s61, %s62
    %p73 = scmp.eq.s32.totalorder %s15, 0
    %p74 = por %p72, %p73
    %p75 = scmp.ne.s32.totalorder %s61, %s62
    %p76 = scmp.eq.s32.totalorder %s16, 1
    %p77 = por %p75, %p76
    %p79 = scmp.ne.s32.totalorder %s62, %s78
    %p80 = scmp.eq.s32.totalorder %s16, 0
    %p81 = por %p79, %p80
    %s82 = ssub.s32 %s18, %s25
    %p83 = scmp.eq.s32.totalorder %s82, 0
    %s85 = sadd.s32 %s84, 1
    %s86 = scalar_select %p83, %s84, %s85
    %p89 = pneg %p83
    %p90 = scmp.eq.s32.totalorder %s10, 1
    %p91 = por %p89, %p90
    %p92 = scmp.ne.s32.totalorder %s84, %s87
    %p93 = scmp.eq.s32.totalorder %s10, 0
    %p94 = por %p92, %p93
    %p95 = scmp.ne.s32.totalorder %s84, %s87
    %p96 = scmp.eq.s32.totalorder %s15, 1
    %p97 = por %p95, %p96
    %p98 = scmp.ne.s32.totalorder %s87, %s88
    %p99 = scmp.eq.s32.totalorder %s15, 0
    %p100 = por %p98, %p99
    %p101 = scmp.ne.s32.totalorder %s87, %s88
    %p102 = scmp.eq.s32.totalorder %s16, 1
    %p103 = por %p101, %p102
    %p105 = scmp.ne.s32.totalorder %s88, %s104
    %p106 = scmp.eq.s32.totalorder %s16, 0
    %p107 = por %p105, %p106
    %s108 = ssub.s32 %s18, %s25
    %p109 = scmp.eq.s32.totalorder %s108, 0
    %s111 = sadd.s32 %s110, 1
    %s112 = scalar_select %p109, %s110, %s111
    %p115 = pneg %p109
    %p116 = scmp.eq.s32.totalorder %s10, 1
    %p117 = por %p115, %p116
    %p118 = scmp.ne.s32.totalorder %s110, %s113
    %p119 = scmp.eq.s32.totalorder %s10, 0
    %p120 = por %p118, %p119
    %p121 = scmp.ne.s32.totalorder %s110, %s113
    %p122 = scmp.eq.s32.totalorder %s15, 1
    %p123 = por %p121, %p122
    %p124 = scmp.ne.s32.totalorder %s113, %s114
    %p125 = scmp.eq.s32.totalorder %s15, 0
    %p126 = por %p124, %p125
    %p127 = scmp.ne.s32.totalorder %s113, %s114
    %p128 = scmp.eq.s32.totalorder %s16, 1
    %p129 = por %p127, %p128
    %p131 = scmp.ne.s32.totalorder %s114, %s130
    %p132 = scmp.eq.s32.totalorder %s16, 0
    %p133 = por %p131, %p132
    %s134 = ssub.s32 %s17, %s29
    %s135 = ssub.s32 %s18, %s25
    %s136 = sor.u32 %s134, %s135
    %p137 = scmp.eq.s32.totalorder %s136, 0
    %s139 = sadd.s32 %s138, 1
    %s140 = scalar_select %p137, %s138, %s139
    %p143 = pneg %p137
    %p144 = scmp.eq.s32.totalorder %s10, 1
    %p145 = por %p143, %p144
    %p146 = scmp.ne.s32.totalorder %s138, %s141
    %p147 = scmp.eq.s32.totalorder %s10, 0
    %p148 = por %p146, %p147
    %p149 = scmp.ne.s32.totalorder %s138, %s141
    %p150 = scmp.eq.s32.totalorder %s15, 1
    %p151 = por %p149, %p150
    %p152 = scmp.ne.s32.totalorder %s141, %s142
    %p153 = scmp.eq.s32.totalorder %s15, 0
    %p154 = por %p152, %p153
    %p155 = scmp.ne.s32.totalorder %s141, %s142
    %p156 = scmp.eq.s32.totalorder %s16, 1
    %p157 = por %p155, %p156
    %p159 = scmp.ne.s32.totalorder %s142, %s158
    %p160 = scmp.eq.s32.totalorder %s16, 0
    %p161 = por %p159, %p160
    %p162 = scmp.le.s32.totalorder 1, %s10
    %p163 = scmp.lt.s32.totalorder %s10, 3
    %p164 = pnand %p162, %p163
    %p165 = pneg %p164
    // Predicated region
    $region9: #{decoder_block_forward.3} parent=5 // pred_check
      _
    $region10: #{decoder_block_forward.3} parent=5 // pred_check_branch
      %167 = sbr.rel (%p164) target = $region12
    $region11: #{decoder_block_forward.3} parent=5 // pred_region
      %s168 = ssub.s32 %s10, 1
      // Predicated region
      $region13: #{decoder_block_forward.3} parent=11 // pred_check
        %p169 = pneg %p74
      $region14: #{decoder_block_forward.3} parent=11 // pred_check_branch
        %171 = sbr.rel (%p169) target = $region16
      $region15: #{decoder_block_forward.3} parent=11 // pred_region
        %p172 = scmp.lt.s32.totalorder %s20, 0
        %s173 = scalar_select %p172, %s20, 0
        %s174 = smul.addr %s173, 4
        %s175 = scalar_lea.vmem %s1, %s174
      $region16: #{decoder_block_forward.3} parent=11 // pred_fallthru
        _
      // Predicated region
      $region17: #{decoder_block_forward.3} parent=11 // pred_check
        %p176 = pneg %p100
      $region18: #{decoder_block_forward.3} parent=11 // pred_check_branch
        %178 = sbr.rel (%p176) target = $region20
      $region19: #{decoder_block_forward.3} parent=11 // pred_region
        %p179 = scmp.lt.s32.totalorder %s20, 0
        %s180 = scalar_select %p179, %s20, 0
        %s181 = scalar_lea.vmem %s2, %s180
      $region20: #{decoder_block_forward.3} parent=11 // pred_fallthru
        _
      // Predicated region
      $region21: #{decoder_block_forward.3} parent=11 // pred_check
        %p182 = pneg %p126
      $region22: #{decoder_block_forward.3} parent=11 // pred_check_branch
        %184 = sbr.rel (%p182) target = $region24
      $region23: #{decoder_block_forward.3} parent=11 // pred_region
        %p185 = scmp.lt.s32.totalorder %s20, 0
        %s186 = scalar_select %p185, %s20, 0
        %s187 = scalar_lea.vmem %s3, %s186
      $region24: #{decoder_block_forward.3} parent=11 // pred_fallthru
        _
    $region12: #{decoder_block_forward.3} parent=5 // pred_fallthru
      _
    %p188 = scmp.lt.s32.totalorder %s10, 2
    // Predicated region
    $region25: #{decoder_block_forward.3} parent=5 // pred_check
      %p189 = pneg %p188
    $region26: #{decoder_block_forward.3} parent=5 // pred_check_branch
      %191 = sbr.rel (%p189) target = $region28
    $region27: #{decoder_block_forward.3} parent=5 // pred_region
      // Predicated region
      $region29: #{decoder_block_forward.3} parent=27 // pred_check
        %p192 = pneg %p42
      $region30: #{decoder_block_forward.3} parent=27 // pred_check_branch
        %194 = sbr.rel (%p192) target = $region32
      $region31: #{decoder_block_forward.3} parent=27 // pred_region
        %s195 = smul.u32 32, %s17
        %p196 = scmp.lt.s32.totalorder %s195, 63
        %s197 = scalar_select %p196, %s195, 63
        %s198 = smul.addr %s197, 4
        %s199 = scalar_lea.vmem %s0, %s198
        %s200 = smul.u32 32, %s17
      $region32: #{decoder_block_forward.3} parent=27 // pred_fallthru
        _
    $region28: #{decoder_block_forward.3} parent=5 // pred_fallthru
      _
    %p201 = scmp.le.s32.totalorder 1, %s10
    %p202 = scmp.lt.s32.totalorder %s10, 3
    %p203 = pnand %p201, %p202
    %p204 = pneg %p203
    // Predicated region
    $region33: #{decoder_block_forward.3} parent=5 // pred_check
      _
    $region34: #{decoder_block_forward.3} parent=5 // pred_check_branch
      %206 = sbr.rel (%p203) target = $region36
    $region35: #{decoder_block_forward.3} parent=5 // pred_region
      %s207 = ssub.s32 %s10, 1
      %s208 = smul.u32 32, %s19
      %p209 = scmp.lt.s32.totalorder %s208, 63
      %s210 = scalar_select %p209, %s208, 63
      %s211 = smul.addr %s210, 4
      %s212 = scalar_lea.vmem %s0, %s211
      %p213 = pneg %p48
      %p214 = pneg %p45
      %p215 = scmp.lt.s32.totalorder %s20, 0
      %s216 = scalar_select %p215, %s20, 0
      %s217 = smul.addr %s216, 4
      %s218 = scalar_lea.vmem %s1, %s217
      %p219 = pneg %p74
      %p220 = pneg %p71
      %p221 = scmp.lt.s32.totalorder %s20, 0
      %s222 = scalar_select %p221, %s20, 0
      %s223 = scalar_lea.vmem %s2, %s222
      %p224 = pneg %p100
      %p225 = pneg %p97
      %p226 = scmp.lt.s32.totalorder %s20, 0
      %s227 = scalar_select %p226, %s20, 0
      %s228 = scalar_lea.vmem %s3, %s227
      %p229 = pneg %p126
      %p230 = pneg %p123
      %p231 = pneg %p154
      %p232 = pneg %p151
      %s233 = smul.u32 32, %s19
      %p234 = scmp.lt.s32.totalorder %s233, 63
      %s235 = scalar_select %p234, %s233, 63
      %p236 = scmp.lt.s32.totalorder %s20, 0
      %s237 = scalar_select %p236, %s20, 0
      %s238 = sadd.s32 %s237, %s235
      %s239 = smul.addr %s238, 4
      %s240 = scalar_lea.vmem %s4, %s239
      %s241 = smul.u32 32, %s19
      %p242 = scmp.lt.s32.totalorder %s241, 63
      %s243 = scalar_select %p242, %s241, 63
      %s244 = smul.addr %s243, 4
      %s245 = scalar_lea.vmem %s0, %s244
      %s246 = smul.u32 32, %s19
      %p247 = scmp.lt.s32.totalorder %s20, 0
      %s248 = scalar_select %p247, %s20, 0
      %s249 = smul.addr %s248, 4
      %s250 = scalar_lea.vmem %s1, %s249
      %p251 = scmp.lt.s32.totalorder %s20, 0
      %s252 = scalar_select %p251, %s20, 0
      %s253 = scalar_lea.vmem %s2, %s252
      %p254 = scmp.lt.s32.totalorder %s20, 0
      %s255 = scalar_select %p254, %s20, 0
      %s256 = scalar_lea.vmem %s3, %s255
      %s257 = smul.u32 32, %s19
      %p258 = scmp.lt.s32.totalorder %s257, 63
      %s259 = scalar_select %p258, %s257, 63
      %p260 = scmp.lt.s32.totalorder %s20, 0
      %s261 = scalar_select %p260, %s20, 0
      %s262 = sadd.s32 %s261, %s259
      %s263 = smul.addr %s262, 4
      %s264 = scalar_lea.vmem %s4, %s263
      %s265 = smul.u32 32, %s19
      %v266 = vld [vmem:[%s245] sm:$0xf]
      %v267 = vld [vmem:[%s245 + $0x4] sm:$0xf]
      %v268 = vld [vmem:[%s245 + $0x8] sm:$0xf]
      %v269 = vld [vmem:[%s245 + $0xc] sm:$0xf]
      %v270 = vld [vmem:[%s245 + $0x10] sm:$0xf]
      %v271 = vld [vmem:[%s245 + $0x14] sm:$0xf]
      %v272 = vld [vmem:[%s245 + $0x18] sm:$0xf]
      %v273 = vld [vmem:[%s245 + $0x1c] sm:$0xf]
      %v274 = vld [vmem:[%s245 + $0x20] sm:$0xf]
      %v275 = vld [vmem:[%s245 + $0x24] sm:$0xf]
      %v276 = vld [vmem:[%s245 + $0x28] sm:$0xf]
      %v277 = vld [vmem:[%s245 + $0x2c] sm:$0xf]
      %v278 = vld [vmem:[%s245 + $0x30] sm:$0xf]
      %v279 = vld [vmem:[%s245 + $0x34] sm:$0xf]
      %v280 = vld [vmem:[%s245 + $0x38] sm:$0xf]
      %v281 = vld [vmem:[%s245 + $0x3c] sm:$0xf]
      %v282 = vld [vmem:[%s245 + $0x40] sm:$0xf]
      %v283 = vld [vmem:[%s245 + $0x44] sm:$0xf]
      %v284 = vld [vmem:[%s245 + $0x48] sm:$0xf]
      %v285 = vld [vmem:[%s245 + $0x4c] sm:$0xf]
      %v286 = vld [vmem:[%s245 + $0x50] sm:$0xf]
      %v287 = vld [vmem:[%s245 + $0x54] sm:$0xf]
      %v288 = vld [vmem:[%s245 + $0x58] sm:$0xf]
      %v289 = vld [vmem:[%s245 + $0x5c] sm:$0xf]
      %v290 = vld [vmem:[%s245 + $0x60] sm:$0xf]
      %v291 = vld [vmem:[%s245 + $0x64] sm:$0xf]
      %v292 = vld [vmem:[%s245 + $0x68] sm:$0xf]
      %v293 = vld [vmem:[%s245 + $0x6c] sm:$0xf]
      %v294 = vld [vmem:[%s245 + $0x70] sm:$0xf]
      %v295 = vld [vmem:[%s245 + $0x74] sm:$0xf]
      %v296 = vld [vmem:[%s245 + $0x78] sm:$0xf]
      %v297 = vld [vmem:[%s245 + $0x7c] sm:$0xf]
      %v298 = vld [vmem:[%s250] sm:$0xf]
      %v299 = vld [vmem:[%s250 + $0x4] sm:$0xf]
      %v300 = vld [vmem:[%s250 + $0x8] sm:$0xf]
      %v301 = vld [vmem:[%s250 + $0xc] sm:$0xf]
      %v302 = vld [vmem:[%s250 + $0x10] sm:$0xf]
      %v303 = vld [vmem:[%s250 + $0x14] sm:$0xf]
      %v304 = vld [vmem:[%s250 + $0x18] sm:$0xf]
      %v305 = vld [vmem:[%s250 + $0x1c] sm:$0xf]
      %v306 = vld [vmem:[%s250 + $0x20] sm:$0xf]
      %v307 = vld [vmem:[%s250 + $0x24] sm:$0xf]
      %v308 = vld [vmem:[%s250 + $0x28] sm:$0xf]
      %v309 = vld [vmem:[%s250 + $0x2c] sm:$0xf]
      %v310 = vld [vmem:[%s250 + $0x30] sm:$0xf]
      %v311 = vld [vmem:[%s250 + $0x34] sm:$0xf]
      %v312 = vld [vmem:[%s250 + $0x38] sm:$0xf]
      %v313 = vld [vmem:[%s250 + $0x3c] sm:$0xf]
      %v346 = vunpack.c.l.b16 %v266
      %v347 = vunpack.c.l.b16 %v267
      %v348 = vunpack.c.l.b16 %v268
      %v349 = vunpack.c.l.b16 %v269
      %v350 = vunpack.c.l.b16 %v270
      %v351 = vunpack.c.l.b16 %v271
      %v352 = vunpack.c.l.b16 %v272
      %v353 = vunpack.c.l.b16 %v273
      %v354 = vunpack.c.l.b16 %v274
      %v355 = vunpack.c.l.b16 %v275
      %v356 = vunpack.c.l.b16 %v276
      %v357 = vunpack.c.l.b16 %v277
      %v358 = vunpack.c.l.b16 %v278
      %v359 = vunpack.c.l.b16 %v279
      %v360 = vunpack.c.l.b16 %v280
      %v361 = vunpack.c.l.b16 %v281
      %v362 = vunpack.c.l.b16 %v282
      %v363 = vunpack.c.l.b16 %v283
      %v364 = vunpack.c.l.b16 %v284
      %v365 = vunpack.c.l.b16 %v285
      %v366 = vunpack.c.l.b16 %v286
      %v367 = vunpack.c.l.b16 %v287
      %v368 = vunpack.c.l.b16 %v288
      %v369 = vunpack.c.l.b16 %v289
      %v370 = vunpack.c.l.b16 %v290
      %v371 = vunpack.c.l.b16 %v291
      %v372 = vunpack.c.l.b16 %v292
      %v373 = vunpack.c.l.b16 %v293
      %v374 = vunpack.c.l.b16 %v294
      %v375 = vunpack.c.l.b16 %v295
      %v376 = vunpack.c.l.b16 %v296
      %v377 = vunpack.c.l.b16 %v297
      %v378 = vpack.c.b16 %v347, %v346
      %v379 = vpack.c.b16 %v349, %v348
      %v380 = vpack.c.b16 %v351, %v350
      %v381 = vpack.c.b16 %v353, %v352
      %v382 = vpack.c.b16 %v355, %v354
      %v383 = vpack.c.b16 %v357, %v356
      %v384 = vpack.c.b16 %v359, %v358
      %v385 = vpack.c.b16 %v361, %v360
      %v386 = vpack.c.b16 %v363, %v362
      %v387 = vpack.c.b16 %v365, %v364
      %v388 = vpack.c.b16 %v367, %v366
      %v389 = vpack.c.b16 %v369, %v368
      %v390 = vpack.c.b16 %v371, %v370
      %v391 = vpack.c.b16 %v373, %v372
      %v392 = vpack.c.b16 %v375, %v374
      %v393 = vpack.c.b16 %v377, %v376
      %v426 = vunpack.c.l.b16 %v298
      %v427 = vunpack.c.l.b16 %v299
      %v428 = vunpack.c.l.b16 %v300
      %v429 = vunpack.c.l.b16 %v301
      %v430 = vunpack.c.l.b16 %v302
      %v431 = vunpack.c.l.b16 %v303
      %v432 = vunpack.c.l.b16 %v304
      %v433 = vunpack.c.l.b16 %v305
      %v434 = vunpack.c.l.b16 %v306
      %v435 = vunpack.c.l.b16 %v307
      %v436 = vunpack.c.l.b16 %v308
      %v437 = vunpack.c.l.b16 %v309
      %v438 = vunpack.c.l.b16 %v310
      %v439 = vunpack.c.l.b16 %v311
      %v440 = vunpack.c.l.b16 %v312
      %v441 = vunpack.c.l.b16 %v313
      %v442 = vpack.c.b16 %v427, %v426
      %v443 = vpack.c.b16 %v429, %v428
      %v444 = vpack.c.b16 %v431, %v430
      %v445 = vpack.c.b16 %v433, %v432
      %v446 = vpack.c.b16 %v435, %v434
      %v447 = vpack.c.b16 %v437, %v436
      %v448 = vpack.c.b16 %v439, %v438
      %v449 = vpack.c.b16 %v441, %v440
      %458 = vmatpush.bf16.msra.mxu0 %v449
      %459 = vmatpush.bf16.msra.mxu0 %v448
      %460 = vmatpush.bf16.msra.mxu0 %v447
      %461 = vmatpush.bf16.msra.mxu0 %v446
      %462 = vmatpush.bf16.msra.mxu0 %v445
      %463 = vmatpush.bf16.msra.mxu0 %v444
      %464 = vmatpush.bf16.msra.mxu0 %v443
      %465 = vmatpush.bf16.msra.mxu0 %v442
      %466 = vmatmul.bf16.gmra.mxu0 %v378
      %v467 = vpop.f32.mrf.mxu0
      %v468 = vadd.f32 0.0, %v467
      %v469 = vpop.f32.mrf.mxu0
      %v470 = vadd.f32 0.0, %v469
      %471 = vmatmul.bf16.gmra.mxu0 %v379
      %v472 = vpop.f32.mrf.mxu0
      %v473 = vadd.f32 0.0, %v472
      %v474 = vpop.f32.mrf.mxu0
      %v475 = vadd.f32 0.0, %v474
      %476 = vmatmul.bf16.gmra.mxu0 %v380
      %v477 = vpop.f32.mrf.mxu0
      %v478 = vadd.f32 0.0, %v477
      %v479 = vpop.f32.mrf.mxu0
      %v480 = vadd.f32 0.0, %v479
      %481 = vmatmul.bf16.gmra.mxu0 %v381
      %v482 = vpop.f32.mrf.mxu0
      %v483 = vadd.f32 0.0, %v482
      %v484 = vpop.f32.mrf.mxu0
      %v485 = vadd.f32 0.0, %v484
      %486 = vmatmul.bf16.gmra.mxu0 %v382
      %v487 = vpop.f32.mrf.mxu0
      %v488 = vadd.f32 0.0, %v487
      %v489 = vpop.f32.mrf.mxu0
      %v490 = vadd.f32 0.0, %v489
      %491 = vmatmul.bf16.gmra.mxu0 %v383
      %v492 = vpop.f32.mrf.mxu0
      %v493 = vadd.f32 0.0, %v492
      %v494 = vpop.f32.mrf.mxu0
      %v495 = vadd.f32 0.0, %v494
      %496 = vmatmul.bf16.gmra.mxu0 %v384
      %v497 = vpop.f32.mrf.mxu0
      %v498 = vadd.f32 0.0, %v497
      %v499 = vpop.f32.mrf.mxu0
      %v500 = vadd.f32 0.0, %v499
      %501 = vmatmul.bf16.gmra.mxu0 %v385
      %v502 = vpop.f32.mrf.mxu0
      %v503 = vadd.f32 0.0, %v502
      %v504 = vpop.f32.mrf.mxu0
      %v505 = vadd.f32 0.0, %v504
      %506 = vmatmul.bf16.gmra.mxu0 %v386
      %v507 = vpop.f32.mrf.mxu0
      %v508 = vadd.f32 0.0, %v507
      %v509 = vpop.f32.mrf.mxu0
      %v510 = vadd.f32 0.0, %v509
      %511 = vmatmul.bf16.gmra.mxu0 %v387
      %v512 = vpop.f32.mrf.mxu0
      %v513 = vadd.f32 0.0, %v512
      %v514 = vpop.f32.mrf.mxu0
      %v515 = vadd.f32 0.0, %v514
      %516 = vmatmul.bf16.gmra.mxu0 %v388
      %v517 = vpop.f32.mrf.mxu0
      %v518 = vadd.f32 0.0, %v517
      %v519 = vpop.f32.mrf.mxu0
      %v520 = vadd.f32 0.0, %v519
      %521 = vmatmul.bf16.gmra.mxu0 %v389
      %v522 = vpop.f32.mrf.mxu0
      %v523 = vadd.f32 0.0, %v522
      %v524 = vpop.f32.mrf.mxu0
      %v525 = vadd.f32 0.0, %v524
      %526 = vmatmul.bf16.gmra.mxu0 %v390
      %v527 = vpop.f32.mrf.mxu0
      %v528 = vadd.f32 0.0, %v527
      %v529 = vpop.f32.mrf.mxu0
      %v530 = vadd.f32 0.0, %v529
      %531 = vmatmul.bf16.gmra.mxu0 %v391
      %v532 = vpop.f32.mrf.mxu0
      %v533 = vadd.f32 0.0, %v532
      %v534 = vpop.f32.mrf.mxu0
      %v535 = vadd.f32 0.0, %v534
      %536 = vmatmul.bf16.gmra.mxu0 %v392
      %v537 = vpop.f32.mrf.mxu0
      %v538 = vadd.f32 0.0, %v537
      %v539 = vpop.f32.mrf.mxu0
      %v540 = vadd.f32 0.0, %v539
      %541 = vmatmul.bf16.gmra.mxu0 %v393
      %v542 = vpop.f32.mrf.mxu0
      %v543 = vadd.f32 0.0, %v542
      %v544 = vpop.f32.mrf.mxu0
      %v545 = vadd.f32 0.0, %v544
      %546 = vdwg.mxu0
      %v547 = vld [vmem:[%s253] sm:$0x1]
      %v549 = vperm.slane %v547, 0
      %v551 = vmul.f32 %v468, %v549
      %v552 = vmul.f32 %v470, %v549
      %v553 = vmul.f32 %v473, %v549
      %v554 = vmul.f32 %v475, %v549
      %v555 = vmul.f32 %v478, %v549
      %v556 = vmul.f32 %v480, %v549
      %v557 = vmul.f32 %v483, %v549
      %v558 = vmul.f32 %v485, %v549
      %v559 = vmul.f32 %v488, %v549
      %v560 = vmul.f32 %v490, %v549
      %v561 = vmul.f32 %v493, %v549
      %v562 = vmul.f32 %v495, %v549
      %v563 = vmul.f32 %v498, %v549
      %v564 = vmul.f32 %v500, %v549
      %v565 = vmul.f32 %v503, %v549
      %v566 = vmul.f32 %v505, %v549
      %v567 = vmul.f32 %v508, %v549
      %v568 = vmul.f32 %v510, %v549
      %v569 = vmul.f32 %v513, %v549
      %v570 = vmul.f32 %v515, %v549
      %v571 = vmul.f32 %v518, %v549
      %v572 = vmul.f32 %v520, %v549
      %v573 = vmul.f32 %v523, %v549
      %v574 = vmul.f32 %v525, %v549
      %v575 = vmul.f32 %v528, %v549
      %v576 = vmul.f32 %v530, %v549
      %v577 = vmul.f32 %v533, %v549
      %v578 = vmul.f32 %v535, %v549
      %v579 = vmul.f32 %v538, %v549
      %v580 = vmul.f32 %v540, %v549
      %v581 = vmul.f32 %v543, %v549
      %v582 = vmul.f32 %v545, %v549
      %v583 = vld [vmem:[%s256] sm:$0x1]
      %v585 = vperm.slane %v583, 0
      %v587 = vadd.f32 %v551, %v585
      %v588 = vadd.f32 %v552, %v585
      %v589 = vadd.f32 %v553, %v585
      %v590 = vadd.f32 %v554, %v585
      %v591 = vadd.f32 %v555, %v585
      %v592 = vadd.f32 %v556, %v585
      %v593 = vadd.f32 %v557, %v585
      %v594 = vadd.f32 %v558, %v585
      %v595 = vadd.f32 %v559, %v585
      %v596 = vadd.f32 %v560, %v585
      %v597 = vadd.f32 %v561, %v585
      %v598 = vadd.f32 %v562, %v585
      %v599 = vadd.f32 %v563, %v585
      %v600 = vadd.f32 %v564, %v585
      %v601 = vadd.f32 %v565, %v585
      %v602 = vadd.f32 %v566, %v585
      %v603 = vadd.f32 %v567, %v585
      %v604 = vadd.f32 %v568, %v585
      %v605 = vadd.f32 %v569, %v585
      %v606 = vadd.f32 %v570, %v585
      %v607 = vadd.f32 %v571, %v585
      %v608 = vadd.f32 %v572, %v585
      %v609 = vadd.f32 %v573, %v585
      %v610 = vadd.f32 %v574, %v585
      %v611 = vadd.f32 %v575, %v585
      %v612 = vadd.f32 %v576, %v585
      %v613 = vadd.f32 %v577, %v585
      %v614 = vadd.f32 %v578, %v585
      %v615 = vadd.f32 %v579, %v585
      %v616 = vadd.f32 %v580, %v585
      %v617 = vadd.f32 %v581, %v585
      %v618 = vadd.f32 %v582, %v585
      %v619 = vmax.f32 %v587, 0.0
      %v620 = vmax.f32 %v588, 0.0
      %v621 = vmax.f32 %v589, 0.0
      %v622 = vmax.f32 %v590, 0.0
      %v623 = vmax.f32 %v591, 0.0
      %v624 = vmax.f32 %v592, 0.0
      %v625 = vmax.f32 %v593, 0.0
      %v626 = vmax.f32 %v594, 0.0
      %v627 = vmax.f32 %v595, 0.0
      %v628 = vmax.f32 %v596, 0.0
      %v629 = vmax.f32 %v597, 0.0
      %v630 = vmax.f32 %v598, 0.0
      %v631 = vmax.f32 %v599, 0.0
      %v632 = vmax.f32 %v600, 0.0
      %v633 = vmax.f32 %v601, 0.0
      %v634 = vmax.f32 %v602, 0.0
      %v635 = vmax.f32 %v603, 0.0
      %v636 = vmax.f32 %v604, 0.0
      %v637 = vmax.f32 %v605, 0.0
      %v638 = vmax.f32 %v606, 0.0
      %v639 = vmax.f32 %v607, 0.0
      %v640 = vmax.f32 %v608, 0.0
      %v641 = vmax.f32 %v609, 0.0
      %v642 = vmax.f32 %v610, 0.0
      %v643 = vmax.f32 %v611, 0.0
      %v644 = vmax.f32 %v612, 0.0
      %v645 = vmax.f32 %v613, 0.0
      %v646 = vmax.f32 %v614, 0.0
      %v647 = vmax.f32 %v615, 0.0
      %v648 = vmax.f32 %v616, 0.0
      %v649 = vmax.f32 %v617, 0.0
      %v650 = vmax.f32 %v618, 0.0
      %v651 = vpack.c.bf16 %v619, %v619
      %v652 = vpack.c.bf16 %v620, %v620
      %v653 = vpack.c.bf16 %v621, %v621
      %v654 = vpack.c.bf16 %v622, %v622
      %v655 = vpack.c.bf16 %v623, %v623
      %v656 = vpack.c.bf16 %v624, %v624
      %v657 = vpack.c.bf16 %v625, %v625
      %v658 = vpack.c.bf16 %v626, %v626
      %v659 = vpack.c.bf16 %v627, %v627
      %v660 = vpack.c.bf16 %v628, %v628
      %v661 = vpack.c.bf16 %v629, %v629
      %v662 = vpack.c.bf16 %v630, %v630
      %v663 = vpack.c.bf16 %v631, %v631
      %v664 = vpack.c.bf16 %v632, %v632
      %v665 = vpack.c.bf16 %v633, %v633
      %v666 = vpack.c.bf16 %v634, %v634
      %v667 = vpack.c.bf16 %v635, %v635
      %v668 = vpack.c.bf16 %v636, %v636
      %v669 = vpack.c.bf16 %v637, %v637
      %v670 = vpack.c.bf16 %v638, %v638
      %v671 = vpack.c.bf16 %v639, %v639
      %v672 = vpack.c.bf16 %v640, %v640
      %v673 = vpack.c.bf16 %v641, %v641
      %v674 = vpack.c.bf16 %v642, %v642
      %v675 = vpack.c.bf16 %v643, %v643
      %v676 = vpack.c.bf16 %v644, %v644
      %v677 = vpack.c.bf16 %v645, %v645
      %v678 = vpack.c.bf16 %v646, %v646
      %v679 = vpack.c.bf16 %v647, %v647
      %v680 = vpack.c.bf16 %v648, %v648
      %v681 = vpack.c.bf16 %v649, %v649
      %v682 = vpack.c.bf16 %v650, %v650
      %683 = vst [vmem:[%s264] sm:$0xf] %v651
      %684 = vst [vmem:[%s264 + $0x4] sm:$0xf] %v652
      %685 = vst [vmem:[%s264 + $0x8] sm:$0xf] %v653
      %686 = vst [vmem:[%s264 + $0xc] sm:$0xf] %v654
      %687 = vst [vmem:[%s264 + $0x10] sm:$0xf] %v655
      %688 = vst [vmem:[%s264 + $0x14] sm:$0xf] %v656
      %689 = vst [vmem:[%s264 + $0x18] sm:$0xf] %v657
      %690 = vst [vmem:[%s264 + $0x1c] sm:$0xf] %v658
      %691 = vst [vmem:[%s264 + $0x20] sm:$0xf] %v659
      %692 = vst [vmem:[%s264 + $0x24] sm:$0xf] %v660
      %693 = vst [vmem:[%s264 + $0x28] sm:$0xf] %v661
      %694 = vst [vmem:[%s264 + $0x2c] sm:$0xf] %v662
      %695 = vst [vmem:[%s264 + $0x30] sm:$0xf] %v663
      %696 = vst [vmem:[%s264 + $0x34] sm:$0xf] %v664
      %697 = vst [vmem:[%s264 + $0x38] sm:$0xf] %v665
      %698 = vst [vmem:[%s264 + $0x3c] sm:$0xf] %v666
      %699 = vst [vmem:[%s264 + $0x40] sm:$0xf] %v667
      %700 = vst [vmem:[%s264 + $0x44] sm:$0xf] %v668
      %701 = vst [vmem:[%s264 + $0x48] sm:$0xf] %v669
      %702 = vst [vmem:[%s264 + $0x4c] sm:$0xf] %v670
      %703 = vst [vmem:[%s264 + $0x50] sm:$0xf] %v671
      %704 = vst [vmem:[%s264 + $0x54] sm:$0xf] %v672
      %705 = vst [vmem:[%s264 + $0x58] sm:$0xf] %v673
      %706 = vst [vmem:[%s264 + $0x5c] sm:$0xf] %v674
      %707 = vst [vmem:[%s264 + $0x60] sm:$0xf] %v675
      %708 = vst [vmem:[%s264 + $0x64] sm:$0xf] %v676
      %709 = vst [vmem:[%s264 + $0x68] sm:$0xf] %v677
      %710 = vst [vmem:[%s264 + $0x6c] sm:$0xf] %v678
      %711 = vst [vmem:[%s264 + $0x70] sm:$0xf] %v679
      %712 = vst [vmem:[%s264 + $0x74] sm:$0xf] %v680
      %713 = vst [vmem:[%s264 + $0x78] sm:$0xf] %v681
      %714 = vst [vmem:[%s264 + $0x7c] sm:$0xf] %v682
      %s715 = smul.u32 32, %s19
      %p716 = scmp.lt.s32.totalorder %s715, 63
      %s717 = scalar_select %p716, %s715, 63
      %p718 = scmp.lt.s32.totalorder %s20, 0
      %s719 = scalar_select %p718, %s20, 0
      %s720 = sadd.s32 %s719, %s717
      %s721 = smul.addr %s720, 4
      %s722 = scalar_lea.vmem %s4, %s721
      // Predicated region
      $region37: #{decoder_block_forward.3} parent=35 // pred_check
        %p723 = pneg %p151
      $region38: #{decoder_block_forward.3} parent=35 // pred_check_branch
        %725 = sbr.rel (%p723) target = $region40
      $region39: #{decoder_block_forward.3} parent=35 // pred_region
        %s726 = smul.u32 32, %s19
      $region40: #{decoder_block_forward.3} parent=35 // pred_fallthru
        _
    $region36: #{decoder_block_forward.3} parent=5 // pred_fallthru
      _
    %p727 = scmp.le.s32.totalorder 2, %s10
    // Predicated region
    $region41: #{decoder_block_forward.3} parent=5 // pred_check
      %p728 = pneg %p727
    $region42: #{decoder_block_forward.3} parent=5 // pred_check_branch
      %730 = sbr.rel (%p728) target = $region44
    $region43: #{decoder_block_forward.3} parent=5 // pred_region
      %s731 = ssub.s32 %s10, 2
      // Predicated region
      $region45: #{decoder_block_forward.3} parent=43 // pred_check
        %p732 = pneg %p157
      $region46: #{decoder_block_forward.3} parent=43 // pred_check_branch
        %734 = sbr.rel (%p732) target = $region48
      $region47: #{decoder_block_forward.3} parent=43 // pred_region
        %s735 = smul.u32 32, %s21
        %p736 = scmp.lt.s32.totalorder %s735, 63
        %s737 = scalar_select %p736, %s735, 63
        %p738 = scmp.lt.s32.totalorder %s22, 0
        %s739 = scalar_select %p738, %s22, 0
        %s740 = sadd.s32 %s739, %s737
        %s741 = smul.addr %s740, 4
        %s742 = scalar_lea.vmem %s4, %s741
      $region48: #{decoder_block_forward.3} parent=43 // pred_fallthru
        _
    $region44: #{decoder_block_forward.3} parent=5 // pred_fallthru
      _
  $region6: #{decoder_block_forward.3} parent=0 // loop_footer
    %s14 = sadd.s32 1, %s10
  $region7: #{decoder_block_forward.3} parent=0 // loop_footer_branch
    %9 = sbr.rel target = $region3
  $region8: #{decoder_block_forward.3} parent=0 // loop_exit
    _

// kernel: decoder_block_forward.5
$region0: #{decoder_block_forward.5}
  #allocation0 [shape = 'u32[]', space=smem, size = 0x4, offset = 0x4, fixed_abs, tag = 'smem constant byte address 0x4 - core index']
  #allocation1 [shape = 'u32[72,128]{1,0:T(1,128)}', space=vmem, size = 0x9000, scoped, tag = 'internal scratch']
  %s0 = inlined_call_operand.vmem [shape: bf16[2048,128], index: 0, kind: input, shape index: {}]
  %s1 = inlined_call_operand.vmem [shape: bf16[128,128], index: 1, kind: input, shape index: {}]
  %s2 = inlined_call_operand.vmem [shape: f32[1,128], index: 2, kind: input, shape index: {}]
  %s3 = inlined_call_operand.vmem [shape: f32[1,128], index: 3, kind: input, shape index: {}]
  %s4 = inlined_call_operand.vmem [shape: f32[2048,128], index: 4, kind: output, shape index: {}]
  %s5 = sld [smem:[#allocation0]]
  $region49: #{decoder_block_forward.5} parent=0
    _
  %s7 = ssub.s32 1, %s5
  %s8 = scalar_select 0, %s7, %s5
  loop: start=0, step=1, limit=10
  $region2: #{decoder_block_forward.5} parent=0 // loop_pre_header
    _
  $region3: #{decoder_block_forward.5} parent=0 // loop_header
    %s10 = sphi 0, %s14
    %p11 = scmp.ge.s32.totalorder %s10, 10
    %s17 = sphi 0, %s29
    %s18 = sphi 0, %s25
    %s19 = sphi 0, %s17
    %s20 = sphi 0, %s18
    %s21 = sphi 0, %s19
    %s22 = sphi 0, %s20
    %s32 = sphi 0, %s34
    %s35 = sphi 0, %s32
    %s36 = sphi 0, %s35
    %s52 = sphi 0, %s36
    %s58 = sphi 0, %s60
    %s61 = sphi 0, %s58
    %s62 = sphi 0, %s61
    %s78 = sphi 0, %s62
    %s84 = sphi 0, %s86
    %s87 = sphi 0, %s84
    %s88 = sphi 0, %s87
    %s104 = sphi 0, %s88
    %s110 = sphi 0, %s112
    %s113 = sphi 0, %s110
    %s114 = sphi 0, %s113
    %s130 = sphi 0, %s114
    %s138 = sphi 0, %s140
    %s141 = sphi 0, %s138
    %s142 = sphi 0, %s141
    %s158 = sphi 0, %s142
  $region4: #{decoder_block_forward.5} parent=0 // loop_header_branch
    %13 = sbr.rel (%p11) target = $region8
  $region5: #{decoder_block_forward.5} parent=0 // loop_body
    %s15 = ssub.s32 %s10, 1
    %s16 = ssub.s32 %s10, 2
    %s23 = sadd.s32 1, %s18
    %p24 = scmp.ge.s32.totalorder %s23, 1
    %s25 = scalar_select %p24, 0, %s23
    %s26 = sadd.s32 1, %s17
    %s27 = scalar_select %p24, %s26, %s17
    %p28 = scmp.ge.s32.totalorder %s27, 8
    %s29 = scalar_select %p28, 0, %s27
    %s30 = ssub.s32 %s17, %s29
    %p31 = scmp.eq.s32.totalorder %s30, 0
    %s33 = sadd.s32 %s32, 1
    %s34 = scalar_select %p31, %s32, %s33
    %p37 = pneg %p31
    %p38 = scmp.eq.s32.totalorder %s10, 7
    %p39 = por %p37, %p38
    %p40 = scmp.ne.s32.totalorder %s32, %s35
    %p41 = scmp.eq.s32.totalorder %s10, 0
    %p42 = por %p40, %p41
    %p43 = scmp.ne.s32.totalorder %s32, %s35
    %p44 = scmp.eq.s32.totalorder %s15, 7
    %p45 = por %p43, %p44
    %p46 = scmp.ne.s32.totalorder %s35, %s36
    %p47 = scmp.eq.s32.totalorder %s15, 0
    %p48 = por %p46, %p47
    %p49 = scmp.ne.s32.totalorder %s35, %s36
    %p50 = scmp.eq.s32.totalorder %s16, 7
    %p51 = por %p49, %p50
    %p53 = scmp.ne.s32.totalorder %s36, %s52
    %p54 = scmp.eq.s32.totalorder %s16, 0
    %p55 = por %p53, %p54
    %s56 = ssub.s32 %s18, %s25
    %p57 = scmp.eq.s32.totalorder %s56, 0
    %s59 = sadd.s32 %s58, 1
    %s60 = scalar_select %p57, %s58, %s59
    %p63 = pneg %p57
    %p64 = scmp.eq.s32.totalorder %s10, 7
    %p65 = por %p63, %p64
    %p66 = scmp.ne.s32.totalorder %s58, %s61
    %p67 = scmp.eq.s32.totalorder %s10, 0
    %p68 = por %p66, %p67
    %p69 = scmp.ne.s32.totalorder %s58, %s61
    %p70 = scmp.eq.s32.totalorder %s15, 7
    %p71 = por %p69, %p70
    %p72 = scmp.ne.s32.totalorder %s61, %s62
    %p73 = scmp.eq.s32.totalorder %s15, 0
    %p74 = por %p72, %p73
    %p75 = scmp.ne.s32.totalorder %s61, %s62
    %p76 = scmp.eq.s32.totalorder %s16, 7
    %p77 = por %p75, %p76
    %p79 = scmp.ne.s32.totalorder %s62, %s78
    %p80 = scmp.eq.s32.totalorder %s16, 0
    %p81 = por %p79, %p80
    %s82 = ssub.s32 %s18, %s25
    %p83 = scmp.eq.s32.totalorder %s82, 0
    %s85 = sadd.s32 %s84, 1
    %s86 = scalar_select %p83, %s84, %s85
    %p89 = pneg %p83
    %p90 = scmp.eq.s32.totalorder %s10, 7
    %p91 = por %p89, %p90
    %p92 = scmp.ne.s32.totalorder %s84, %s87
    %p93 = scmp.eq.s32.totalorder %s10, 0
    %p94 = por %p92, %p93
    %p95 = scmp.ne.s32.totalorder %s84, %s87
    %p96 = scmp.eq.s32.totalorder %s15, 7
    %p97 = por %p95, %p96
    %p98 = scmp.ne.s32.totalorder %s87, %s88
    %p99 = scmp.eq.s32.totalorder %s15, 0
    %p100 = por %p98, %p99
    %p101 = scmp.ne.s32.totalorder %s87, %s88
    %p102 = scmp.eq.s32.totalorder %s16, 7
    %p103 = por %p101, %p102
    %p105 = scmp.ne.s32.totalorder %s88, %s104
    %p106 = scmp.eq.s32.totalorder %s16, 0
    %p107 = por %p105, %p106
    %s108 = ssub.s32 %s18, %s25
    %p109 = scmp.eq.s32.totalorder %s108, 0
    %s111 = sadd.s32 %s110, 1
    %s112 = scalar_select %p109, %s110, %s111
    %p115 = pneg %p109
    %p116 = scmp.eq.s32.totalorder %s10, 7
    %p117 = por %p115, %p116
    %p118 = scmp.ne.s32.totalorder %s110, %s113
    %p119 = scmp.eq.s32.totalorder %s10, 0
    %p120 = por %p118, %p119
    %p121 = scmp.ne.s32.totalorder %s110, %s113
    %p122 = scmp.eq.s32.totalorder %s15, 7
    %p123 = por %p121, %p122
    %p124 = scmp.ne.s32.totalorder %s113, %s114
    %p125 = scmp.eq.s32.totalorder %s15, 0
    %p126 = por %p124, %p125
    %p127 = scmp.ne.s32.totalorder %s113, %s114
    %p128 = scmp.eq.s32.totalorder %s16, 7
    %p129 = por %p127, %p128
    %p131 = scmp.ne.s32.totalorder %s114, %s130
    %p132 = scmp.eq.s32.totalorder %s16, 0
    %p133 = por %p131, %p132
    %s134 = ssub.s32 %s17, %s29
    %s135 = ssub.s32 %s18, %s25
    %s136 = sor.u32 %s134, %s135
    %p137 = scmp.eq.s32.totalorder %s136, 0
    %s139 = sadd.s32 %s138, 1
    %s140 = scalar_select %p137, %s138, %s139
    %p143 = pneg %p137
    %p144 = scmp.eq.s32.totalorder %s10, 7
    %p145 = por %p143, %p144
    %p146 = scmp.ne.s32.totalorder %s138, %s141
    %p147 = scmp.eq.s32.totalorder %s10, 0
    %p148 = por %p146, %p147
    %p149 = scmp.ne.s32.totalorder %s138, %s141
    %p150 = scmp.eq.s32.totalorder %s15, 7
    %p151 = por %p149, %p150
    %p152 = scmp.ne.s32.totalorder %s141, %s142
    %p153 = scmp.eq.s32.totalorder %s15, 0
    %p154 = por %p152, %p153
    %p155 = scmp.ne.s32.totalorder %s141, %s142
    %p156 = scmp.eq.s32.totalorder %s16, 7
    %p157 = por %p155, %p156
    %p159 = scmp.ne.s32.totalorder %s142, %s158
    %p160 = scmp.eq.s32.totalorder %s16, 0
    %p161 = por %p159, %p160
    %p162 = scmp.le.s32.totalorder 1, %s10
    %p163 = scmp.lt.s32.totalorder %s10, 9
    %p164 = pnand %p162, %p163
    %p165 = pneg %p164
    // Predicated region
    $region9: #{decoder_block_forward.5} parent=5 // pred_check
      _
    $region10: #{decoder_block_forward.5} parent=5 // pred_check_branch
      %167 = sbr.rel (%p164) target = $region12
    $region11: #{decoder_block_forward.5} parent=5 // pred_region
      %s168 = ssub.s32 %s10, 1
      // Predicated region
      $region13: #{decoder_block_forward.5} parent=11 // pred_check
        %p169 = pneg %p74
      $region14: #{decoder_block_forward.5} parent=11 // pred_check_branch
        %171 = sbr.rel (%p169) target = $region16
      $region15: #{decoder_block_forward.5} parent=11 // pred_region
        %p172 = scmp.lt.s32.totalorder %s20, 0
        %s173 = scalar_select %p172, %s20, 0
        %s174 = smul.addr %s173, 4
        %s175 = scalar_lea.vmem %s1, %s174
      $region16: #{decoder_block_forward.5} parent=11 // pred_fallthru
        _
      // Predicated region
      $region17: #{decoder_block_forward.5} parent=11 // pred_check
        %p176 = pneg %p100
      $region18: #{decoder_block_forward.5} parent=11 // pred_check_branch
        %178 = sbr.rel (%p176) target = $region20
      $region19: #{decoder_block_forward.5} parent=11 // pred_region
        %p179 = scmp.lt.s32.totalorder %s20, 0
        %s180 = scalar_select %p179, %s20, 0
        %s181 = scalar_lea.vmem %s2, %s180
      $region20: #{decoder_block_forward.5} parent=11 // pred_fallthru
        _
      // Predicated region
      $region21: #{decoder_block_forward.5} parent=11 // pred_check
        %p182 = pneg %p126
      $region22: #{decoder_block_forward.5} parent=11 // pred_check_branch
        %184 = sbr.rel (%p182) target = $region24
      $region23: #{decoder_block_forward.5} parent=11 // pred_region
        %p185 = scmp.lt.s32.totalorder %s20, 0
        %s186 = scalar_select %p185, %s20, 0
        %s187 = scalar_lea.vmem %s3, %s186
      $region24: #{decoder_block_forward.5} parent=11 // pred_fallthru
        _
    $region12: #{decoder_block_forward.5} parent=5 // pred_fallthru
      _
    %p188 = scmp.lt.s32.totalorder %s10, 8
    // Predicated region
    $region25: #{decoder_block_forward.5} parent=5 // pred_check
      %p189 = pneg %p188
    $region26: #{decoder_block_forward.5} parent=5 // pred_check_branch
      %191 = sbr.rel (%p189) target = $region28
    $region27: #{decoder_block_forward.5} parent=5 // pred_region
      // Predicated region
      $region29: #{decoder_block_forward.5} parent=27 // pred_check
        %p192 = pneg %p42
      $region30: #{decoder_block_forward.5} parent=27 // pred_check_branch
        %194 = sbr.rel (%p192) target = $region32
      $region31: #{decoder_block_forward.5} parent=27 // pred_region
        %s195 = smul.u32 32, %s17
        %p196 = scmp.lt.s32.totalorder %s195, 255
        %s197 = scalar_select %p196, %s195, 255
        %s198 = smul.addr %s197, 4
        %s199 = scalar_lea.vmem %s0, %s198
        %s200 = smul.u32 32, %s17
      $region32: #{decoder_block_forward.5} parent=27 // pred_fallthru
        _
    $region28: #{decoder_block_forward.5} parent=5 // pred_fallthru
      _
    %p201 = scmp.le.s32.totalorder 1, %s10
    %p202 = scmp.lt.s32.totalorder %s10, 9
    %p203 = pnand %p201, %p202
    %p204 = pneg %p203
    // Predicated region
    $region33: #{decoder_block_forward.5} parent=5 // pred_check
      _
    $region34: #{decoder_block_forward.5} parent=5 // pred_check_branch
      %206 = sbr.rel (%p203) target = $region36
    $region35: #{decoder_block_forward.5} parent=5 // pred_region
      %s207 = ssub.s32 %s10, 1
      %s208 = smul.u32 32, %s19
      %p209 = scmp.lt.s32.totalorder %s208, 255
      %s210 = scalar_select %p209, %s208, 255
      %s211 = smul.addr %s210, 4
      %s212 = scalar_lea.vmem %s0, %s211
      %p213 = pneg %p48
      %p214 = pneg %p45
      %p215 = scmp.lt.s32.totalorder %s20, 0
      %s216 = scalar_select %p215, %s20, 0
      %s217 = smul.addr %s216, 4
      %s218 = scalar_lea.vmem %s1, %s217
      %p219 = pneg %p74
      %p220 = pneg %p71
      %p221 = scmp.lt.s32.totalorder %s20, 0
      %s222 = scalar_select %p221, %s20, 0
      %s223 = scalar_lea.vmem %s2, %s222
      %p224 = pneg %p100
      %p225 = pneg %p97
      %p226 = scmp.lt.s32.totalorder %s20, 0
      %s227 = scalar_select %p226, %s20, 0
      %s228 = scalar_lea.vmem %s3, %s227
      %p229 = pneg %p126
      %p230 = pneg %p123
      %p231 = pneg %p154
      %p232 = pneg %p151
      %s233 = smul.u32 32, %s19
      %p234 = scmp.lt.s32.totalorder %s233, 255
      %s235 = scalar_select %p234, %s233, 255
      %p236 = scmp.lt.s32.totalorder %s20, 0
      %s237 = scalar_select %p236, %s20, 0
      %s238 = sadd.s32 %s237, %s235
      %s239 = smul.addr %s238, 8
      %s240 = scalar_lea.vmem %s4, %s239
      %s241 = smul.u32 32, %s19
      %p242 = scmp.lt.s32.totalorder %s241, 255
      %s243 = scalar_select %p242, %s241, 255
      %s244 = smul.addr %s243, 4
      %s245 = scalar_lea.vmem %s0, %s244
      %s246 = smul.u32 32, %s19
      %p247 = scmp.lt.s32.totalorder %s20, 0
      %s248 = scalar_select %p247, %s20, 0
      %s249 = smul.addr %s248, 4
      %s250 = scalar_lea.vmem %s1, %s249
      %p251 = scmp.lt.s32.totalorder %s20, 0
      %s252 = scalar_select %p251, %s20, 0
      %s253 = scalar_lea.vmem %s2, %s252
      %p254 = scmp.lt.s32.totalorder %s20, 0
      %s255 = scalar_select %p254, %s20, 0
      %s256 = scalar_lea.vmem %s3, %s255
      %s257 = smul.u32 32, %s19
      %p258 = scmp.lt.s32.totalorder %s257, 255
      %s259 = scalar_select %p258, %s257, 255
      %p260 = scmp.lt.s32.totalorder %s20, 0
      %s261 = scalar_select %p260, %s20, 0
      %s262 = sadd.s32 %s261, %s259
      %s263 = smul.addr %s262, 8
      %s264 = scalar_lea.vmem %s4, %s263
      %s265 = smul.u32 32, %s19
      %v266 = vld [vmem:[%s245] sm:$0xf]
      %v267 = vld [vmem:[%s245 + $0x4] sm:$0xf]
      %v268 = vld [vmem:[%s245 + $0x8] sm:$0xf]
      %v269 = vld [vmem:[%s245 + $0xc] sm:$0xf]
      %v270 = vld [vmem:[%s245 + $0x10] sm:$0xf]
      %v271 = vld [vmem:[%s245 + $0x14] sm:$0xf]
      %v272 = vld [vmem:[%s245 + $0x18] sm:$0xf]
      %v273 = vld [vmem:[%s245 + $0x1c] sm:$0xf]
      %v274 = vld [vmem:[%s245 + $0x20] sm:$0xf]
      %v275 = vld [vmem:[%s245 + $0x24] sm:$0xf]
      %v276 = vld [vmem:[%s245 + $0x28] sm:$0xf]
      %v277 = vld [vmem:[%s245 + $0x2c] sm:$0xf]
      %v278 = vld [vmem:[%s245 + $0x30] sm:$0xf]
      %v279 = vld [vmem:[%s245 + $0x34] sm:$0xf]
      %v280 = vld [vmem:[%s245 + $0x38] sm:$0xf]
      %v281 = vld [vmem:[%s245 + $0x3c] sm:$0xf]
      %v282 = vld [vmem:[%s245 + $0x40] sm:$0xf]
      %v283 = vld [vmem:[%s245 + $0x44] sm:$0xf]
      %v284 = vld [vmem:[%s245 + $0x48] sm:$0xf]
      %v285 = vld [vmem:[%s245 + $0x4c] sm:$0xf]
      %v286 = vld [vmem:[%s245 + $0x50] sm:$0xf]
      %v287 = vld [vmem:[%s245 + $0x54] sm:$0xf]
      %v288 = vld [vmem:[%s245 + $0x58] sm:$0xf]
      %v289 = vld [vmem:[%s245 + $0x5c] sm:$0xf]
      %v290 = vld [vmem:[%s245 + $0x60] sm:$0xf]
      %v291 = vld [vmem:[%s245 + $0x64] sm:$0xf]
      %v292 = vld [vmem:[%s245 + $0x68] sm:$0xf]
      %v293 = vld [vmem:[%s245 + $0x6c] sm:$0xf]
      %v294 = vld [vmem:[%s245 + $0x70] sm:$0xf]
      %v295 = vld [vmem:[%s245 + $0x74] sm:$0xf]
      %v296 = vld [vmem:[%s245 + $0x78] sm:$0xf]
      %v297 = vld [vmem:[%s245 + $0x7c] sm:$0xf]
      %v298 = vld [vmem:[%s250] sm:$0xf]
      %v299 = vld [vmem:[%s250 + $0x4] sm:$0xf]
      %v300 = vld [vmem:[%s250 + $0x8] sm:$0xf]
      %v301 = vld [vmem:[%s250 + $0xc] sm:$0xf]
      %v302 = vld [vmem:[%s250 + $0x10] sm:$0xf]
      %v303 = vld [vmem:[%s250 + $0x14] sm:$0xf]
      %v304 = vld [vmem:[%s250 + $0x18] sm:$0xf]
      %v305 = vld [vmem:[%s250 + $0x1c] sm:$0xf]
      %v306 = vld [vmem:[%s250 + $0x20] sm:$0xf]
      %v307 = vld [vmem:[%s250 + $0x24] sm:$0xf]
      %v308 = vld [vmem:[%s250 + $0x28] sm:$0xf]
      %v309 = vld [vmem:[%s250 + $0x2c] sm:$0xf]
      %v310 = vld [vmem:[%s250 + $0x30] sm:$0xf]
      %v311 = vld [vmem:[%s250 + $0x34] sm:$0xf]
      %v312 = vld [vmem:[%s250 + $0x38] sm:$0xf]
      %v313 = vld [vmem:[%s250 + $0x3c] sm:$0xf]
      %v346 = vunpack.c.l.b16 %v266
      %v347 = vunpack.c.l.b16 %v267
      %v348 = vunpack.c.l.b16 %v268
      %v349 = vunpack.c.l.b16 %v269
      %v350 = vunpack.c.l.b16 %v270
      %v351 = vunpack.c.l.b16 %v271
      %v352 = vunpack.c.l.b16 %v272
      %v353 = vunpack.c.l.b16 %v273
      %v354 = vunpack.c.l.b16 %v274
      %v355 = vunpack.c.l.b16 %v275
      %v356 = vunpack.c.l.b16 %v276
      %v357 = vunpack.c.l.b16 %v277
      %v358 = vunpack.c.l.b16 %v278
      %v359 = vunpack.c.l.b16 %v279
      %v360 = vunpack.c.l.b16 %v280
      %v361 = vunpack.c.l.b16 %v281
      %v362 = vunpack.c.l.b16 %v282
      %v363 = vunpack.c.l.b16 %v283
      %v364 = vunpack.c.l.b16 %v284
      %v365 = vunpack.c.l.b16 %v285
      %v366 = vunpack.c.l.b16 %v286
      %v367 = vunpack.c.l.b16 %v287
      %v368 = vunpack.c.l.b16 %v288
      %v369 = vunpack.c.l.b16 %v289
      %v370 = vunpack.c.l.b16 %v290
      %v371 = vunpack.c.l.b16 %v291
      %v372 = vunpack.c.l.b16 %v292
      %v373 = vunpack.c.l.b16 %v293
      %v374 = vunpack.c.l.b16 %v294
      %v375 = vunpack.c.l.b16 %v295
      %v376 = vunpack.c.l.b16 %v296
      %v377 = vunpack.c.l.b16 %v297
      %v378 = vpack.c.b16 %v347, %v346
      %v379 = vpack.c.b16 %v349, %v348
      %v380 = vpack.c.b16 %v351, %v350
      %v381 = vpack.c.b16 %v353, %v352
      %v382 = vpack.c.b16 %v355, %v354
      %v383 = vpack.c.b16 %v357, %v356
      %v384 = vpack.c.b16 %v359, %v358
      %v385 = vpack.c.b16 %v361, %v360
      %v386 = vpack.c.b16 %v363, %v362
      %v387 = vpack.c.b16 %v365, %v364
      %v388 = vpack.c.b16 %v367, %v366
      %v389 = vpack.c.b16 %v369, %v368
      %v390 = vpack.c.b16 %v371, %v370
      %v391 = vpack.c.b16 %v373, %v372
      %v392 = vpack.c.b16 %v375, %v374
      %v393 = vpack.c.b16 %v377, %v376
      %v426 = vunpack.c.l.b16 %v298
      %v427 = vunpack.c.l.b16 %v299
      %v428 = vunpack.c.l.b16 %v300
      %v429 = vunpack.c.l.b16 %v301
      %v430 = vunpack.c.l.b16 %v302
      %v431 = vunpack.c.l.b16 %v303
      %v432 = vunpack.c.l.b16 %v304
      %v433 = vunpack.c.l.b16 %v305
      %v434 = vunpack.c.l.b16 %v306
      %v435 = vunpack.c.l.b16 %v307
      %v436 = vunpack.c.l.b16 %v308
      %v437 = vunpack.c.l.b16 %v309
      %v438 = vunpack.c.l.b16 %v310
      %v439 = vunpack.c.l.b16 %v311
      %v440 = vunpack.c.l.b16 %v312
      %v441 = vunpack.c.l.b16 %v313
      %v442 = vpack.c.b16 %v427, %v426
      %v443 = vpack.c.b16 %v429, %v428
      %v444 = vpack.c.b16 %v431, %v430
      %v445 = vpack.c.b16 %v433, %v432
      %v446 = vpack.c.b16 %v435, %v434
      %v447 = vpack.c.b16 %v437, %v436
      %v448 = vpack.c.b16 %v439, %v438
      %v449 = vpack.c.b16 %v441, %v440
      %458 = vmatpush.bf16.msra.mxu0 %v449
      %459 = vmatpush.bf16.msra.mxu0 %v448
      %460 = vmatpush.bf16.msra.mxu0 %v447
      %461 = vmatpush.bf16.msra.mxu0 %v446
      %462 = vmatpush.bf16.msra.mxu0 %v445
      %463 = vmatpush.bf16.msra.mxu0 %v444
      %464 = vmatpush.bf16.msra.mxu0 %v443
      %465 = vmatpush.bf16.msra.mxu0 %v442
      %466 = vmatmul.bf16.gmra.mxu0 %v378
      %v467 = vpop.f32.mrf.mxu0
      %v468 = vadd.f32 0.0, %v467
      %v469 = vpop.f32.mrf.mxu0
      %v470 = vadd.f32 0.0, %v469
      %471 = vmatmul.bf16.gmra.mxu0 %v379
      %v472 = vpop.f32.mrf.mxu0
      %v473 = vadd.f32 0.0, %v472
      %v474 = vpop.f32.mrf.mxu0
      %v475 = vadd.f32 0.0, %v474
      %476 = vmatmul.bf16.gmra.mxu0 %v380
      %v477 = vpop.f32.mrf.mxu0
      %v478 = vadd.f32 0.0, %v477
      %v479 = vpop.f32.mrf.mxu0
      %v480 = vadd.f32 0.0, %v479
      %481 = vmatmul.bf16.gmra.mxu0 %v381
      %v482 = vpop.f32.mrf.mxu0
      %v483 = vadd.f32 0.0, %v482
      %v484 = vpop.f32.mrf.mxu0
      %v485 = vadd.f32 0.0, %v484
      %486 = vmatmul.bf16.gmra.mxu0 %v382
      %v487 = vpop.f32.mrf.mxu0
      %v488 = vadd.f32 0.0, %v487
      %v489 = vpop.f32.mrf.mxu0
      %v490 = vadd.f32 0.0, %v489
      %491 = vmatmul.bf16.gmra.mxu0 %v383
      %v492 = vpop.f32.mrf.mxu0
      %v493 = vadd.f32 0.0, %v492
      %v494 = vpop.f32.mrf.mxu0
      %v495 = vadd.f32 0.0, %v494
      %496 = vmatmul.bf16.gmra.mxu0 %v384
      %v497 = vpop.f32.mrf.mxu0
      %v498 = vadd.f32 0.0, %v497
      %v499 = vpop.f32.mrf.mxu0
      %v500 = vadd.f32 0.0, %v499
      %501 = vmatmul.bf16.gmra.mxu0 %v385
      %v502 = vpop.f32.mrf.mxu0
      %v503 = vadd.f32 0.0, %v502
      %v504 = vpop.f32.mrf.mxu0
      %v505 = vadd.f32 0.0, %v504
      %506 = vmatmul.bf16.gmra.mxu0 %v386
      %v507 = vpop.f32.mrf.mxu0
      %v508 = vadd.f32 0.0, %v507
      %v509 = vpop.f32.mrf.mxu0
      %v510 = vadd.f32 0.0, %v509
      %511 = vmatmul.bf16.gmra.mxu0 %v387
      %v512 = vpop.f32.mrf.mxu0
      %v513 = vadd.f32 0.0, %v512
      %v514 = vpop.f32.mrf.mxu0
      %v515 = vadd.f32 0.0, %v514
      %516 = vmatmul.bf16.gmra.mxu0 %v388
      %v517 = vpop.f32.mrf.mxu0
      %v518 = vadd.f32 0.0, %v517
      %v519 = vpop.f32.mrf.mxu0
      %v520 = vadd.f32 0.0, %v519
      %521 = vmatmul.bf16.gmra.mxu0 %v389
      %v522 = vpop.f32.mrf.mxu0
      %v523 = vadd.f32 0.0, %v522
      %v524 = vpop.f32.mrf.mxu0
      %v525 = vadd.f32 0.0, %v524
      %526 = vmatmul.bf16.gmra.mxu0 %v390
      %v527 = vpop.f32.mrf.mxu0
      %v528 = vadd.f32 0.0, %v527
      %v529 = vpop.f32.mrf.mxu0
      %v530 = vadd.f32 0.0, %v529
      %531 = vmatmul.bf16.gmra.mxu0 %v391
      %v532 = vpop.f32.mrf.mxu0
      %v533 = vadd.f32 0.0, %v532
      %v534 = vpop.f32.mrf.mxu0
      %v535 = vadd.f32 0.0, %v534
      %536 = vmatmul.bf16.gmra.mxu0 %v392
      %v537 = vpop.f32.mrf.mxu0
      %v538 = vadd.f32 0.0, %v537
      %v539 = vpop.f32.mrf.mxu0
      %v540 = vadd.f32 0.0, %v539
      %541 = vmatmul.bf16.gmra.mxu0 %v393
      %v542 = vpop.f32.mrf.mxu0
      %v543 = vadd.f32 0.0, %v542
      %v544 = vpop.f32.mrf.mxu0
      %v545 = vadd.f32 0.0, %v544
      %546 = vdwg.mxu0
      %v547 = vld [vmem:[%s253] sm:$0x1]
      %v549 = vperm.slane %v547, 0
      %v551 = vmul.f32 %v468, %v549
      %v552 = vmul.f32 %v470, %v549
      %v553 = vmul.f32 %v473, %v549
      %v554 = vmul.f32 %v475, %v549
      %v555 = vmul.f32 %v478, %v549
      %v556 = vmul.f32 %v480, %v549
      %v557 = vmul.f32 %v483, %v549
      %v558 = vmul.f32 %v485, %v549
      %v559 = vmul.f32 %v488, %v549
      %v560 = vmul.f32 %v490, %v549
      %v561 = vmul.f32 %v493, %v549
      %v562 = vmul.f32 %v495, %v549
      %v563 = vmul.f32 %v498, %v549
      %v564 = vmul.f32 %v500, %v549
      %v565 = vmul.f32 %v503, %v549
      %v566 = vmul.f32 %v505, %v549
      %v567 = vmul.f32 %v508, %v549
      %v568 = vmul.f32 %v510, %v549
      %v569 = vmul.f32 %v513, %v549
      %v570 = vmul.f32 %v515, %v549
      %v571 = vmul.f32 %v518, %v549
      %v572 = vmul.f32 %v520, %v549
      %v573 = vmul.f32 %v523, %v549
      %v574 = vmul.f32 %v525, %v549
      %v575 = vmul.f32 %v528, %v549
      %v576 = vmul.f32 %v530, %v549
      %v577 = vmul.f32 %v533, %v549
      %v578 = vmul.f32 %v535, %v549
      %v579 = vmul.f32 %v538, %v549
      %v580 = vmul.f32 %v540, %v549
      %v581 = vmul.f32 %v543, %v549
      %v582 = vmul.f32 %v545, %v549
      %v583 = vld [vmem:[%s256] sm:$0x1]
      %v585 = vperm.slane %v583, 0
      %v587 = vadd.f32 %v551, %v585
      %v588 = vadd.f32 %v552, %v585
      %v589 = vadd.f32 %v553, %v585
      %v590 = vadd.f32 %v554, %v585
      %v591 = vadd.f32 %v555, %v585
      %v592 = vadd.f32 %v556, %v585
      %v593 = vadd.f32 %v557, %v585
      %v594 = vadd.f32 %v558, %v585
      %v595 = vadd.f32 %v559, %v585
      %v596 = vadd.f32 %v560, %v585
      %v597 = vadd.f32 %v561, %v585
      %v598 = vadd.f32 %v562, %v585
      %v599 = vadd.f32 %v563, %v585
      %v600 = vadd.f32 %v564, %v585
      %v601 = vadd.f32 %v565, %v585
      %v602 = vadd.f32 %v566, %v585
      %v603 = vadd.f32 %v567, %v585
      %v604 = vadd.f32 %v568, %v585
      %v605 = vadd.f32 %v569, %v585
      %v606 = vadd.f32 %v570, %v585
      %v607 = vadd.f32 %v571, %v585
      %v608 = vadd.f32 %v572, %v585
      %v609 = vadd.f32 %v573, %v585
      %v610 = vadd.f32 %v574, %v585
      %v611 = vadd.f32 %v575, %v585
      %v612 = vadd.f32 %v576, %v585
      %v613 = vadd.f32 %v577, %v585
      %v614 = vadd.f32 %v578, %v585
      %v615 = vadd.f32 %v579, %v585
      %v616 = vadd.f32 %v580, %v585
      %v617 = vadd.f32 %v581, %v585
      %v618 = vadd.f32 %v582, %v585
      %v619 = vmax.f32 %v587, 0.0
      %v620 = vmax.f32 %v588, 0.0
      %v621 = vmax.f32 %v589, 0.0
      %v622 = vmax.f32 %v590, 0.0
      %v623 = vmax.f32 %v591, 0.0
      %v624 = vmax.f32 %v592, 0.0
      %v625 = vmax.f32 %v593, 0.0
      %v626 = vmax.f32 %v594, 0.0
      %v627 = vmax.f32 %v595, 0.0
      %v628 = vmax.f32 %v596, 0.0
      %v629 = vmax.f32 %v597, 0.0
      %v630 = vmax.f32 %v598, 0.0
      %v631 = vmax.f32 %v599, 0.0
      %v632 = vmax.f32 %v600, 0.0
      %v633 = vmax.f32 %v601, 0.0
      %v634 = vmax.f32 %v602, 0.0
      %v635 = vmax.f32 %v603, 0.0
      %v636 = vmax.f32 %v604, 0.0
      %v637 = vmax.f32 %v605, 0.0
      %v638 = vmax.f32 %v606, 0.0
      %v639 = vmax.f32 %v607, 0.0
      %v640 = vmax.f32 %v608, 0.0
      %v641 = vmax.f32 %v609, 0.0
      %v642 = vmax.f32 %v610, 0.0
      %v643 = vmax.f32 %v611, 0.0
      %v644 = vmax.f32 %v612, 0.0
      %v645 = vmax.f32 %v613, 0.0
      %v646 = vmax.f32 %v614, 0.0
      %v647 = vmax.f32 %v615, 0.0
      %v648 = vmax.f32 %v616, 0.0
      %v649 = vmax.f32 %v617, 0.0
      %v650 = vmax.f32 %v618, 0.0
      %651 = vst [vmem:[%s264] sm:$0xff] %v619
      %652 = vst [vmem:[%s264 + $0x8] sm:$0xff] %v620
      %653 = vst [vmem:[%s264 + $0x10] sm:$0xff] %v621
      %654 = vst [vmem:[%s264 + $0x18] sm:$0xff] %v622
      %655 = vst [vmem:[%s264 + $0x20] sm:$0xff] %v623
      %656 = vst [vmem:[%s264 + $0x28] sm:$0xff] %v624
      %657 = vst [vmem:[%s264 + $0x30] sm:$0xff] %v625
      %658 = vst [vmem:[%s264 + $0x38] sm:$0xff] %v626
      %659 = vst [vmem:[%s264 + $0x40] sm:$0xff] %v627
      %660 = vst [vmem:[%s264 + $0x48] sm:$0xff] %v628
      %661 = vst [vmem:[%s264 + $0x50] sm:$0xff] %v629
      %662 = vst [vmem:[%s264 + $0x58] sm:$0xff] %v630
      %663 = vst [vmem:[%s264 + $0x60] sm:$0xff] %v631
      %664 = vst [vmem:[%s264 + $0x68] sm:$0xff] %v632
      %665 = vst [vmem:[%s264 + $0x70] sm:$0xff] %v633
      %666 = vst [vmem:[%s264 + $0x78] sm:$0xff] %v634
      %667 = vst [vmem:[%s264 + $0x80] sm:$0xff] %v635
      %668 = vst [vmem:[%s264 + $0x88] sm:$0xff] %v636
      %669 = vst [vmem:[%s264 + $0x90] sm:$0xff] %v637
      %670 = vst [vmem:[%s264 + $0x98] sm:$0xff] %v638
      %671 = vst [vmem:[%s264 + $0xa0] sm:$0xff] %v639
      %672 = vst [vmem:[%s264 + $0xa8] sm:$0xff] %v640
      %673 = vst [vmem:[%s264 + $0xb0] sm:$0xff] %v641
      %674 = vst [vmem:[%s264 + $0xb8] sm:$0xff] %v642
      %675 = vst [vmem:[%s264 + $0xc0] sm:$0xff] %v643
      %676 = vst [vmem:[%s264 + $0xc8] sm:$0xff] %v644
      %677 = vst [vmem:[%s264 + $0xd0] sm:$0xff] %v645
      %678 = vst [vmem:[%s264 + $0xd8] sm:$0xff] %v646
      %679 = vst [vmem:[%s264 + $0xe0] sm:$0xff] %v647
      %680 = vst [vmem:[%s264 + $0xe8] sm:$0xff] %v648
      %681 = vst [vmem:[%s264 + $0xf0] sm:$0xff] %v649
      %682 = vst [vmem:[%s264 + $0xf8] sm:$0xff] %v650
      %s683 = smul.u32 32, %s19
      %p684 = scmp.lt.s32.totalorder %s683, 255
      %s685 = scalar_select %p684, %s683, 255
      %p686 = scmp.lt.s32.totalorder %s20, 0
      %s687 = scalar_select %p686, %s20, 0
      %s688 = sadd.s32 %s687, %s685
      %s689 = smul.addr %s688, 8
      %s690 = scalar_lea.vmem %s4, %s689
      // Predicated region
      $region37: #{decoder_block_forward.5} parent=35 // pred_check
        %p691 = pneg %p151
      $region38: #{decoder_block_forward.5} parent=35 // pred_check_branch
        %693 = sbr.rel (%p691) target = $region40
      $region39: #{decoder_block_forward.5} parent=35 // pred_region
        %s694 = smul.u32 32, %s19
      $region40: #{decoder_block_forward.5} parent=35 // pred_fallthru
        _
    $region36: #{decoder_block_forward.5} parent=5 // pred_fallthru
      _
    %p695 = scmp.le.s32.totalorder 2, %s10
    // Predicated region
    $region41: #{decoder_block_forward.5} parent=5 // pred_check
      %p696 = pneg %p695
    $region42: #{decoder_block_forward.5} parent=5 // pred_check_branch
      %698 = sbr.rel (%p696) target = $region44
    $region43: #{decoder_block_forward.5} parent=5 // pred_region
      %s699 = ssub.s32 %s10, 2
      // Predicated region
      $region45: #{decoder_block_forward.5} parent=43 // pred_check
        %p700 = pneg %p157
      $region46: #{decoder_block_forward.5} parent=43 // pred_check_branch
        %702 = sbr.rel (%p700) target = $region48
      $region47: #{decoder_block_forward.5} parent=43 // pred_region
        %s703 = smul.u32 32, %s21
        %p704 = scmp.lt.s32.totalorder %s703, 255
        %s705 = scalar_select %p704, %s703, 255
        %p706 = scmp.lt.s32.totalorder %s22, 0
        %s707 = scalar_select %p706, %s22, 0
        %s708 = sadd.s32 %s707, %s705
        %s709 = smul.addr %s708, 8
        %s710 = scalar_lea.vmem %s4, %s709
      $region48: #{decoder_block_forward.5} parent=43 // pred_fallthru
        _
    $region44: #{decoder_block_forward.5} parent=5 // pred_fallthru
      _
  $region6: #{decoder_block_forward.5} parent=0 // loop_footer
    %s14 = sadd.s32 1, %s10
  $region7: #{decoder_block_forward.5} parent=0 // loop_footer_branch
    %9 = sbr.rel target = $region3
  $region8: #{decoder_block_forward.5} parent=0 // loop_exit
    _

</llo_original>
